<compile_context>
chip_gen: v7x
topology: tpu7x:2x2x1
jax: 0.10.0
libtpu: 0.0.40
codegen_flags: <defaults>
</compile_context>

<pallas_src>
import functools

import numpy as np
import jax
import jax.numpy as jnp
from jax.experimental import pallas as pl
from jax.experimental.pallas import tpu as pltpu

H = 128      # padded hidden width (lane-dense)
N_PAD = 128  # padded node count
F_PAD = 128  # padded node-feature width
G_PAD = 8    # padded graph-row count for pooling / output (sublane-dense)


def _round_up(x, m):
    return ((x + m - 1) // m) * m


# ----------------------------------------------------------------------------
# Single fused kernel: SCB encoder stack + GNN tail, all VMEM-resident.
# ----------------------------------------------------------------------------
def _cyclenet_kernel(l1_ref, s_ref, x_ref, gsrc_ref, sdst_ref, pool_ref,
                     w1_ref, b1_ref, wf_ref, bfb_ref, w2b_ref,
                     w24_ref, b24_ref, w4b_ref, b4b_ref,
                     enc_w_ref, enc_b_ref, cw1_ref, cb1_ref, cw2_ref, cb2_ref,
                     ow_ref, ob_ref, o_ref, *, G, max_beta, B8, m_pad, nl):
    f32, bf16 = jnp.float32, jnp.bfloat16

    # --- SCB_encoder (Linear(1,64)+ReLU+Linear(64,64)) folded with the
    #     SCB_emb-dependent slice of SCB_encoder2's first Linear(65,128),
    #     evaluated for every (graph, beta) row in one matmul (M = G*B8).
    s = s_ref[...]                                               # (G*B8, 1)
    h1 = jnp.maximum(s * w1_ref[...] + b1_ref[...], 0.0)         # (G*B8, 64)
    pre = jnp.dot(h1.astype(bf16), wf_ref[...],
                  preferred_element_type=f32) + bfb_ref[...]     # (G*B8, 128)

    # --- SCB_encoder2 ReLU stage + sum over beta as a per-beta running
    #     accumulate over dense (m_pad, 128) operands (padded betti rows are
    #     included in the sum, exactly like the reference pad_SCB semantics).
    l1 = l1_ref[...]                                             # (G*m_pad, max_beta)
    w2b = w2b_ref[...]                                           # (1, 128)
    u_blocks = []
    for g in range(G):
        u = jnp.zeros((m_pad, H), f32)
        for bi in range(max_beta):
            r = g * B8 + bi
            pre_row = pre[r:r + 1, :]                            # (1, 128)
            l1_col = l1[g * m_pad:(g + 1) * m_pad, bi:bi + 1]    # (m_pad, 1)
            u = u + jnp.maximum(pre_row + l1_col * w2b, 0.0)
        u_blocks.append(u)
    u_all = jnp.concatenate(u_blocks, axis=0)                    # (G*m_pad, 128)

    # --- SCB_encoder2 second Linear folded with SCB_encoder4 first Linear
    #     (no ReLU between them), ReLU, SCB_encoder4 second Linear.
    h3 = jnp.maximum(jnp.dot(u_all.astype(bf16), w24_ref[...],
                             preferred_element_type=f32) + b24_ref[...], 0.0)
    edge_e = jnp.dot(h3.astype(bf16), w4b_ref[...],
                     preferred_element_type=f32) + b4b_ref[...]   # (G*m_pad, 128)

    # --- GNN tail: node encoder + GINE-style convs + mean pool + head.
    #     Padded edge slots have zero gsrc rows / sdst columns, so their
    #     (garbage but finite) embeddings never propagate.
    x_h = jnp.dot(x_ref[...], enc_w_ref[...],
                  preferred_element_type=f32) + enc_b_ref[...]    # (N_PAD, H)
    for l in range(nl):
        xb = x_h.astype(bf16)
        x_src = jnp.dot(gsrc_ref[...], xb, preferred_element_type=f32)
        msg = jnp.maximum(x_src + edge_e, 0.0).astype(bf16)
        agg = jnp.dot(sdst_ref[...], msg, preferred_element_type=f32)
        h = x_h + agg                                            # eps = 0
        h = jnp.maximum(jnp.dot(h.astype(bf16), cw1_ref[l],
                                preferred_element_type=f32) + cb1_ref[l], 0.0)
        h = jnp.dot(h.astype(bf16), cw2_ref[l],
                    preferred_element_type=f32) + cb2_ref[l]
        x_h = jnp.maximum(h, 0.0)

    pooled = jnp.dot(pool_ref[...], x_h.astype(bf16),
                     preferred_element_type=f32)                  # (G_PAD, H)
    o_ref[...] = jnp.dot(pooled.astype(bf16), ow_ref[...],
                         preferred_element_type=f32) + ob_ref[...]


def cyclenet_forward(l1, s, x_pad, gsrc, sdst, pool, scb_w, gnn_w,
                     *, G, max_beta, B8, m_pad, nl_gnn, n_out):
    out = pl.pallas_call(
        functools.partial(_cyclenet_kernel, G=G, max_beta=max_beta, B8=B8,
                          m_pad=m_pad, nl=nl_gnn),
        out_shape=jax.ShapeDtypeStruct((G_PAD, H), jnp.float32),
        compiler_params=pltpu.CompilerParams(
            vmem_limit_bytes=32 * 1024 * 1024),
    )(l1, s, x_pad, gsrc, sdst, pool,
      scb_w["w1"], scb_w["b1"], scb_w["wf"], scb_w["bfb"], scb_w["w2b"],
      scb_w["w24"], scb_w["b24"], scb_w["w4b"], scb_w["b4b"],
      gnn_w["enc_w"], gnn_w["enc_b"], gnn_w["cw1"], gnn_w["cb1"],
      gnn_w["cw2"], gnn_w["cb2"], gnn_w["out_w"], gnn_w["out_b"])
    return out[:G, :n_out]


# ----------------------------------------------------------------------------
# Host-side (numpy) batch construction — done once, outside the kernel path.
# ----------------------------------------------------------------------------
def build_scb_batch(hodge_emb):
    G = len(hodge_emb)
    max_edge = max(int(he[1].shape[0]) for he in hodge_emb)
    max_beta = max(int(he[2].shape[0]) for he in hodge_emb)
    m_pad = _round_up(max_edge, 8)          # sublane-dense edge axis
    B8 = _round_up(max_beta, 8)             # sublane-dense beta axis for `pre`
    l1 = np.zeros((G * m_pad, max_beta), np.float32)
    s = np.zeros((G * B8, 1), np.float32)
    for g, he in enumerate(hodge_emb):
        scb = np.abs(np.asarray(he[2], dtype=np.float32))   # (beta_g, edge_g)
        bg, eg = scb.shape
        l1[g * m_pad:g * m_pad + eg, :bg] = scb.T
        s[g * B8:g * B8 + max_beta, 0] = \
            l1[g * m_pad:(g + 1) * m_pad, :].sum(axis=0)     # L1.sum(dim=edges)
    return (jnp.asarray(l1), jnp.asarray(s), max_edge, max_beta, m_pad, B8)


def build_graph_mats(edge_index, batch, n_nodes, G, m_pad):
    edge_index = np.asarray(edge_index)
    batch = np.asarray(batch)
    E = edge_index.shape[1]
    src, dst = edge_index[0], edge_index[1]
    gsrc = np.zeros((G * m_pad, N_PAD), np.float32)   # edge-slot <- src node
    sdst = np.zeros((N_PAD, G * m_pad), np.float32)   # dst node <- edge-slot
    local = np.zeros(G, np.int64)
    for e in range(E):
        g = int(batch[src[e]])
        slot = g * m_pad + int(local[g])
        local[g] += 1
        gsrc[slot, int(src[e])] = 1.0
        sdst[int(dst[e]), slot] = 1.0
    pool = np.zeros((G_PAD, N_PAD), np.float32)
    for n in range(n_nodes):
        pool[int(batch[n]), n] = 1.0
    pool = pool / np.maximum(pool.sum(axis=1, keepdims=True), 1.0)
    return (jnp.asarray(gsrc, jnp.bfloat16), jnp.asarray(sdst, jnp.bfloat16),
            jnp.asarray(pool, jnp.bfloat16))


def pad_nodes(x):
    x = np.asarray(x, np.float32)
    out = np.zeros((N_PAD, F_PAD), np.float32)
    out[:x.shape[0], :x.shape[1]] = x
    return jnp.asarray(out, jnp.bfloat16)


# ----------------------------------------------------------------------------
# Parameter init (synthetic, (in, out) weight layout) and kernel-ready packing.
# ----------------------------------------------------------------------------
def init_params(key, node_feat, n_hid, n_out, nl_gnn):
    ks = iter(jax.random.split(key, 48))

    def lin(din, dout):
        w = jax.random.normal(next(ks), (din, dout), jnp.float32) * \
            (2.0 / (din + dout)) ** 0.5
        b = jax.random.normal(next(ks), (dout,), jnp.float32) * 0.01
        return w, b

    w1, b1 = lin(1, 64)
    w1b, b1b = lin(64, 64)
    w2, b2 = lin(65, 128)
    w2c, b2c = lin(128, 128)
    w4a, b4a = lin(128, n_hid)
    w4b, b4b = lin(n_hid, n_hid)
    enc_w, enc_b = lin(node_feat, n_hid)
    convs = []
    for _ in range(nl_gnn):
        cw1, cb1 = lin(n_hid, n_hid)
        cw2, cb2 = lin(n_hid, n_hid)
        convs.append({"w1": cw1, "b1": cb1, "w2": cw2, "b2": cb2})
    out_w, out_b = lin(n_hid, n_out)
    return {
        "scb": {"w1": w1, "b1": b1, "w1b": w1b, "b1b": b1b, "w2": w2, "b2": b2,
                "w2c": w2c, "b2c": b2c, "w4a": w4a, "b4a": b4a,
                "w4b": w4b, "b4b": b4b},
        "gnn": {"enc_w": enc_w, "enc_b": enc_b, "convs": convs,
                "out_w": out_w, "out_b": out_b},
    }


def _pad2(a, rows, cols):
    a = np.asarray(a, np.float32)
    if a.ndim == 1:
        a = a.reshape(1, -1)
    out = np.zeros((rows, cols), np.float32)
    out[:a.shape[0], :a.shape[1]] = a
    return out


def prepare_scb_weights(p, max_beta):
    w1 = np.asarray(p["w1"], np.float32).reshape(1, 64)
    b1 = _pad2(p["b1"], 1, 64)
    w2 = np.asarray(p["w2"], np.float32)                    # (65, 128)
    w2a, w2b = w2[:64], w2[64:65]
    b2 = _pad2(p["b2"], 1, 128)
    w1b = np.asarray(p["w1b"], np.float32)
    b1b = _pad2(p["b1b"], 1, 64)
    wf = w1b @ w2a                       # fold Linear(64,64) with Linear(65,128)[:64]
    bfb = b1b @ w2a + b2
    w4a_pad = _pad2(p["w4a"], 128, H)
    w2c = np.asarray(p["w2c"], np.float32)
    b2c = _pad2(p["b2c"], 1, 128)
    w24 = w2c @ w4a_pad                  # fold (no ReLU between them)
    b24 = (float(max_beta) * b2c) @ w4a_pad + _pad2(p["b4a"], 1, H)
    return {
        "w1": jnp.asarray(w1), "b1": jnp.asarray(b1),
        "wf": jnp.asarray(wf, jnp.bfloat16), "bfb": jnp.asarray(bfb),
        "w2b": jnp.asarray(w2b),
        "w24": jnp.asarray(w24, jnp.bfloat16), "b24": jnp.asarray(b24),
        "w4b": jnp.asarray(_pad2(p["w4b"], H, H), jnp.bfloat16),
        "b4b": jnp.asarray(_pad2(p["b4b"], 1, H)),
    }


def prepare_gnn_weights(p):
    cw1 = np.stack([_pad2(c["w1"], H, H) for c in p["convs"]])
    cb1 = np.stack([_pad2(c["b1"], 1, H) for c in p["convs"]])
    cw2 = np.stack([_pad2(c["w2"], H, H) for c in p["convs"]])
    cb2 = np.stack([_pad2(c["b2"], 1, H) for c in p["convs"]])
    return {
        "enc_w": jnp.asarray(_pad2(p["enc_w"], F_PAD, H), jnp.bfloat16),
        "enc_b": jnp.asarray(_pad2(p["enc_b"], 1, H)),
        "cw1": jnp.asarray(cw1, jnp.bfloat16), "cb1": jnp.asarray(cb1),
        "cw2": jnp.asarray(cw2, jnp.bfloat16), "cb2": jnp.asarray(cb2),
        "out_w": jnp.asarray(_pad2(p["out_w"], H, H), jnp.bfloat16),
        "out_b": jnp.asarray(_pad2(p["out_b"], 1, H)),
    }


# ----------------------------------------------------------------------------
if __name__ == "__main__":
    key = jax.random.PRNGKey(0)
    kx, k2, k3, kp = jax.random.split(key, 4)
    node_feat, n_hid, n_out, nl_gnn = 4, 16, 8, 2

    # Two small graphs: graph0 = nodes 0..4 (8 edges), graph1 = nodes 5..9 (6 edges).
    edges0 = [(0, 1), (1, 0), (1, 2), (2, 1), (2, 3), (3, 4), (4, 0), (0, 3)]
    edges1 = [(5, 6), (6, 5), (6, 7), (7, 8), (8, 9), (9, 5)]
    edge_index = jnp.array(list(zip(*(edges0 + edges1))), dtype=jnp.int32)  # (2, 14)
    x_nodes = jax.random.normal(kx, (10, node_feat), jnp.float32)
    batch = jnp.array([0] * 5 + [1] * 5, dtype=jnp.int32)
    n_nodes = 10

    # hodge_emb: per graph (cycle_emb, per-edge tensor, SCB basis (beta_g, edge_g)).
    hodge_emb = [
        (jnp.zeros((8, 1), jnp.float32), jnp.zeros((8, 8), jnp.float32),
         jax.random.normal(k2, (4, 8), jnp.float32)),
        (jnp.zeros((6, 1), jnp.float32), jnp.zeros((6, 6), jnp.float32),
         jax.random.normal(k3, (2, 6), jnp.float32)),
    ]
    G = len(hodge_emb)

    params = init_params(kp, node_feat, n_hid, n_out, nl_gnn)

    # One-time host-side batch construction (numpy; no XLA glue around the kernel).
    l1, s_col, max_edge, max_beta, m_pad, B8 = build_scb_batch(hodge_emb)
    gsrc, sdst, pool = build_graph_mats(edge_index, batch, n_nodes, G, m_pad)
    x_pad = pad_nodes(x_nodes)

    scb_w = prepare_scb_weights(params["scb"], max_beta)
    gnn_w = prepare_gnn_weights(params["gnn"])

    fwd = jax.jit(functools.partial(
        cyclenet_forward, G=G, max_beta=max_beta, B8=B8, m_pad=m_pad,
        nl_gnn=nl_gnn, n_out=n_out))
    out = fwd(l1, s_col, x_pad, gsrc, sdst, pool, scb_w, gnn_w)
    out = jax.block_until_ready(out)

    assert out.shape == (G, n_out) and bool(jnp.all(jnp.isfinite(out)))
    print("KERNEL_OK")
</pallas_src>

<mosaic_0001>
module attributes {stable_mosaic.version = 11 : i64} {
  func.func @_cyclenet_kernel(%arg0: memref<16x4xf32, #tpu.memory_space<vmem>>, %arg1: memref<16x1xf32, #tpu.memory_space<vmem>>, %arg2: memref<128x128xbf16, #tpu.memory_space<vmem>>, %arg3: memref<16x128xbf16, #tpu.memory_space<vmem>>, %arg4: memref<128x16xbf16, #tpu.memory_space<vmem>>, %arg5: memref<8x128xbf16, #tpu.memory_space<vmem>>, %arg6: memref<1x64xf32, #tpu.memory_space<vmem>>, %arg7: memref<1x64xf32, #tpu.memory_space<vmem>>, %arg8: memref<64x128xbf16, #tpu.memory_space<vmem>>, %arg9: memref<1x128xf32, #tpu.memory_space<vmem>>, %arg10: memref<1x128xf32, #tpu.memory_space<vmem>>, %arg11: memref<128x128xbf16, #tpu.memory_space<vmem>>, %arg12: memref<1x128xf32, #tpu.memory_space<vmem>>, %arg13: memref<128x128xbf16, #tpu.memory_space<vmem>>, %arg14: memref<1x128xf32, #tpu.memory_space<vmem>>, %arg15: memref<128x128xbf16, #tpu.memory_space<vmem>>, %arg16: memref<1x128xf32, #tpu.memory_space<vmem>>, %arg17: memref<2x128x128xbf16, #tpu.memory_space<vmem>>, %arg18: memref<2x1x128xf32, #tpu.memory_space<vmem>>, %arg19: memref<2x128x128xbf16, #tpu.memory_space<vmem>>, %arg20: memref<2x1x128xf32, #tpu.memory_space<vmem>>, %arg21: memref<128x128xbf16, #tpu.memory_space<vmem>>, %arg22: memref<1x128xf32, #tpu.memory_space<vmem>>, %arg23: memref<8x128xf32, #tpu.memory_space<vmem>>) attributes {dimension_semantics = [], scalar_prefetch = 0 : i64, scratch_operands = 0 : i64, tpu.core_type = #tpu.core_type<tc>} {
    %c0 = arith.constant 0 : index
    %c0_0 = arith.constant 0 : index
    %0 = vector.load %arg1[%c0, %c0_0] : memref<16x1xf32, #tpu.memory_space<vmem>>, vector<16x1xf32>
    %c0_1 = arith.constant 0 : index
    %c0_2 = arith.constant 0 : index
    %1 = vector.load %arg6[%c0_1, %c0_2] : memref<1x64xf32, #tpu.memory_space<vmem>>, vector<1x64xf32>
    %2 = vector.broadcast %0 : vector<16x1xf32> to vector<16x64xf32>
    %3 = vector.broadcast %1 : vector<1x64xf32> to vector<16x64xf32>
    %4 = arith.mulf %2, %3 : vector<16x64xf32>
    %c0_3 = arith.constant 0 : index
    %c0_4 = arith.constant 0 : index
    %5 = vector.load %arg7[%c0_3, %c0_4] : memref<1x64xf32, #tpu.memory_space<vmem>>, vector<1x64xf32>
    %6 = vector.broadcast %5 : vector<1x64xf32> to vector<16x64xf32>
    %7 = arith.addf %4, %6 : vector<16x64xf32>
    %cst = arith.constant 0.000000e+00 : f32
    %8 = vector.broadcast %cst : f32 to vector<16x64xf32>
    %9 = arith.maximumf %7, %8 : vector<16x64xf32>
    %10 = arith.truncf %9 : vector<16x64xf32> to vector<16x64xbf16>
    %c0_5 = arith.constant 0 : index
    %c0_6 = arith.constant 0 : index
    %11 = vector.load %arg8[%c0_5, %c0_6] : memref<64x128xbf16, #tpu.memory_space<vmem>>, vector<64x128xbf16>
    %cst_7 = arith.constant dense<0.000000e+00> : vector<16x128xf32>
    %12 = tpu.matmul %10, %11, %cst_7 {dimension_numbers = #tpu.dot_dimension_numbers<[1], [0], [0], [1], [0, 0, 1, 1], [], []>} : vector<16x64xbf16>, vector<64x128xbf16>, vector<16x128xf32> -> vector<16x128xf32>
    %c0_8 = arith.constant 0 : index
    %c0_9 = arith.constant 0 : index
    %13 = vector.load %arg9[%c0_8, %c0_9] : memref<1x128xf32, #tpu.memory_space<vmem>>, vector<1x128xf32>
    %14 = vector.broadcast %13 : vector<1x128xf32> to vector<16x128xf32>
    %15 = arith.addf %12, %14 : vector<16x128xf32>
    %c0_10 = arith.constant 0 : index
    %c0_11 = arith.constant 0 : index
    %16 = vector.load %arg0[%c0_10, %c0_11] : memref<16x4xf32, #tpu.memory_space<vmem>>, vector<16x4xf32>
    %c0_12 = arith.constant 0 : index
    %c0_13 = arith.constant 0 : index
    %17 = vector.load %arg10[%c0_12, %c0_13] : memref<1x128xf32, #tpu.memory_space<vmem>>, vector<1x128xf32>
    %cst_14 = arith.constant 0.000000e+00 : f32
    %18 = vector.broadcast %cst_14 : f32 to vector<8x128xf32>
    %19 = vector.extract_strided_slice %15 {offsets = [0, 0], sizes = [1, 128], strides = [1, 1]} : vector<16x128xf32> to vector<1x128xf32>
    %20 = vector.extract_strided_slice %16 {offsets = [0, 0], sizes = [8, 1], strides = [1, 1]} : vector<16x4xf32> to vector<8x1xf32>
    %21 = vector.broadcast %20 : vector<8x1xf32> to vector<8x128xf32>
    %22 = vector.broadcast %17 : vector<1x128xf32> to vector<8x128xf32>
    %23 = arith.mulf %21, %22 : vector<8x128xf32>
    %24 = vector.broadcast %19 : vector<1x128xf32> to vector<8x128xf32>
    %25 = arith.addf %24, %23 : vector<8x128xf32>
    %cst_15 = arith.constant 0.000000e+00 : f32
    %26 = vector.broadcast %cst_15 : f32 to vector<8x128xf32>
    %27 = arith.maximumf %25, %26 : vector<8x128xf32>
    %28 = arith.addf %18, %27 : vector<8x128xf32>
    %29 = vector.extract_strided_slice %15 {offsets = [1, 0], sizes = [1, 128], strides = [1, 1]} : vector<16x128xf32> to vector<1x128xf32>
    %30 = vector.extract_strided_slice %16 {offsets = [0, 1], sizes = [8, 1], strides = [1, 1]} : vector<16x4xf32> to vector<8x1xf32>
    %31 = vector.broadcast %30 : vector<8x1xf32> to vector<8x128xf32>
    %32 = vector.broadcast %17 : vector<1x128xf32> to vector<8x128xf32>
    %33 = arith.mulf %31, %32 : vector<8x128xf32>
    %34 = vector.broadcast %29 : vector<1x128xf32> to vector<8x128xf32>
    %35 = arith.addf %34, %33 : vector<8x128xf32>
    %cst_16 = arith.constant 0.000000e+00 : f32
    %36 = vector.broadcast %cst_16 : f32 to vector<8x128xf32>
    %37 = arith.maximumf %35, %36 : vector<8x128xf32>
    %38 = arith.addf %28, %37 : vector<8x128xf32>
    %39 = vector.extract_strided_slice %15 {offsets = [2, 0], sizes = [1, 128], strides = [1, 1]} : vector<16x128xf32> to vector<1x128xf32>
    %40 = vector.extract_strided_slice %16 {offsets = [0, 2], sizes = [8, 1], strides = [1, 1]} : vector<16x4xf32> to vector<8x1xf32>
    %41 = vector.broadcast %40 : vector<8x1xf32> to vector<8x128xf32>
    %42 = vector.broadcast %17 : vector<1x128xf32> to vector<8x128xf32>
    %43 = arith.mulf %41, %42 : vector<8x128xf32>
    %44 = vector.broadcast %39 : vector<1x128xf32> to vector<8x128xf32>
    %45 = arith.addf %44, %43 : vector<8x128xf32>
    %cst_17 = arith.constant 0.000000e+00 : f32
    %46 = vector.broadcast %cst_17 : f32 to vector<8x128xf32>
    %47 = arith.maximumf %45, %46 : vector<8x128xf32>
    %48 = arith.addf %38, %47 : vector<8x128xf32>
    %49 = vector.extract_strided_slice %15 {offsets = [3, 0], sizes = [1, 128], strides = [1, 1]} : vector<16x128xf32> to vector<1x128xf32>
    %50 = vector.extract_strided_slice %16 {offsets = [0, 3], sizes = [8, 1], strides = [1, 1]} : vector<16x4xf32> to vector<8x1xf32>
    %51 = vector.broadcast %50 : vector<8x1xf32> to vector<8x128xf32>
    %52 = vector.broadcast %17 : vector<1x128xf32> to vector<8x128xf32>
    %53 = arith.mulf %51, %52 : vector<8x128xf32>
    %54 = vector.broadcast %49 : vector<1x128xf32> to vector<8x128xf32>
    %55 = arith.addf %54, %53 : vector<8x128xf32>
    %cst_18 = arith.constant 0.000000e+00 : f32
    %56 = vector.broadcast %cst_18 : f32 to vector<8x128xf32>
    %57 = arith.maximumf %55, %56 : vector<8x128xf32>
    %58 = arith.addf %48, %57 : vector<8x128xf32>
    %cst_19 = arith.constant 0.000000e+00 : f32
    %59 = vector.broadcast %cst_19 : f32 to vector<8x128xf32>
    %60 = vector.extract_strided_slice %15 {offsets = [8, 0], sizes = [1, 128], strides = [1, 1]} : vector<16x128xf32> to vector<1x128xf32>
    %61 = vector.extract_strided_slice %16 {offsets = [8, 0], sizes = [8, 1], strides = [1, 1]} : vector<16x4xf32> to vector<8x1xf32>
    %62 = vector.broadcast %61 : vector<8x1xf32> to vector<8x128xf32>
    %63 = vector.broadcast %17 : vector<1x128xf32> to vector<8x128xf32>
    %64 = arith.mulf %62, %63 : vector<8x128xf32>
    %65 = vector.broadcast %60 : vector<1x128xf32> to vector<8x128xf32>
    %66 = arith.addf %65, %64 : vector<8x128xf32>
    %cst_20 = arith.constant 0.000000e+00 : f32
    %67 = vector.broadcast %cst_20 : f32 to vector<8x128xf32>
    %68 = arith.maximumf %66, %67 : vector<8x128xf32>
    %69 = arith.addf %59, %68 : vector<8x128xf32>
    %70 = vector.extract_strided_slice %15 {offsets = [9, 0], sizes = [1, 128], strides = [1, 1]} : vector<16x128xf32> to vector<1x128xf32>
    %71 = vector.extract_strided_slice %16 {offsets = [8, 1], sizes = [8, 1], strides = [1, 1]} : vector<16x4xf32> to vector<8x1xf32>
    %72 = vector.broadcast %71 : vector<8x1xf32> to vector<8x128xf32>
    %73 = vector.broadcast %17 : vector<1x128xf32> to vector<8x128xf32>
    %74 = arith.mulf %72, %73 : vector<8x128xf32>
    %75 = vector.broadcast %70 : vector<1x128xf32> to vector<8x128xf32>
    %76 = arith.addf %75, %74 : vector<8x128xf32>
    %cst_21 = arith.constant 0.000000e+00 : f32
    %77 = vector.broadcast %cst_21 : f32 to vector<8x128xf32>
    %78 = arith.maximumf %76, %77 : vector<8x128xf32>
    %79 = arith.addf %69, %78 : vector<8x128xf32>
    %80 = vector.extract_strided_slice %15 {offsets = [10, 0], sizes = [1, 128], strides = [1, 1]} : vector<16x128xf32> to vector<1x128xf32>
    %81 = vector.extract_strided_slice %16 {offsets = [8, 2], sizes = [8, 1], strides = [1, 1]} : vector<16x4xf32> to vector<8x1xf32>
    %82 = vector.broadcast %81 : vector<8x1xf32> to vector<8x128xf32>
    %83 = vector.broadcast %17 : vector<1x128xf32> to vector<8x128xf32>
    %84 = arith.mulf %82, %83 : vector<8x128xf32>
    %85 = vector.broadcast %80 : vector<1x128xf32> to vector<8x128xf32>
    %86 = arith.addf %85, %84 : vector<8x128xf32>
    %cst_22 = arith.constant 0.000000e+00 : f32
    %87 = vector.broadcast %cst_22 : f32 to vector<8x128xf32>
    %88 = arith.maximumf %86, %87 : vector<8x128xf32>
    %89 = arith.addf %79, %88 : vector<8x128xf32>
    %90 = vector.extract_strided_slice %15 {offsets = [11, 0], sizes = [1, 128], strides = [1, 1]} : vector<16x128xf32> to vector<1x128xf32>
    %91 = vector.extract_strided_slice %16 {offsets = [8, 3], sizes = [8, 1], strides = [1, 1]} : vector<16x4xf32> to vector<8x1xf32>
    %92 = vector.broadcast %91 : vector<8x1xf32> to vector<8x128xf32>
    %93 = vector.broadcast %17 : vector<1x128xf32> to vector<8x128xf32>
    %94 = arith.mulf %92, %93 : vector<8x128xf32>
    %95 = vector.broadcast %90 : vector<1x128xf32> to vector<8x128xf32>
    %96 = arith.addf %95, %94 : vector<8x128xf32>
    %cst_23 = arith.constant 0.000000e+00 : f32
    %97 = vector.broadcast %cst_23 : f32 to vector<8x128xf32>
    %98 = arith.maximumf %96, %97 : vector<8x128xf32>
    %99 = arith.addf %89, %98 : vector<8x128xf32>
    %100 = tpu.concatenate %58, %99 in 0 : vector<8x128xf32>, vector<8x128xf32> -> vector<16x128xf32>
    %101 = arith.truncf %100 : vector<16x128xf32> to vector<16x128xbf16>
    %c0_24 = arith.constant 0 : index
    %c0_25 = arith.constant 0 : index
    %102 = vector.load %arg11[%c0_24, %c0_25] : memref<128x128xbf16, #tpu.memory_space<vmem>>, vector<128x128xbf16>
    %cst_26 = arith.constant dense<0.000000e+00> : vector<16x128xf32>
    %103 = tpu.matmul %101, %102, %cst_26 {dimension_numbers = #tpu.dot_dimension_numbers<[1], [0], [0], [1], [0, 0, 1, 1], [], []>} : vector<16x128xbf16>, vector<128x128xbf16>, vector<16x128xf32> -> vector<16x128xf32>
    %c0_27 = arith.constant 0 : index
    %c0_28 = arith.constant 0 : index
    %104 = vector.load %arg12[%c0_27, %c0_28] : memref<1x128xf32, #tpu.memory_space<vmem>>, vector<1x128xf32>
    %105 = vector.broadcast %104 : vector<1x128xf32> to vector<16x128xf32>
    %106 = arith.addf %103, %105 : vector<16x128xf32>
    %cst_29 = arith.constant 0.000000e+00 : f32
    %107 = vector.broadcast %cst_29 : f32 to vector<16x128xf32>
    %108 = arith.maximumf %106, %107 : vector<16x128xf32>
    %109 = arith.truncf %108 : vector<16x128xf32> to vector<16x128xbf16>
    %c0_30 = arith.constant 0 : index
    %c0_31 = arith.constant 0 : index
    %110 = vector.load %arg13[%c0_30, %c0_31] : memref<128x128xbf16, #tpu.memory_space<vmem>>, vector<128x128xbf16>
    %cst_32 = arith.constant dense<0.000000e+00> : vector<16x128xf32>
    %111 = tpu.matmul %109, %110, %cst_32 {dimension_numbers = #tpu.dot_dimension_numbers<[1], [0], [0], [1], [0, 0, 1, 1], [], []>} : vector<16x128xbf16>, vector<128x128xbf16>, vector<16x128xf32> -> vector<16x128xf32>
    %c0_33 = arith.constant 0 : index
    %c0_34 = arith.constant 0 : index
    %112 = vector.load %arg14[%c0_33, %c0_34] : memref<1x128xf32, #tpu.memory_space<vmem>>, vector<1x128xf32>
    %113 = vector.broadcast %112 : vector<1x128xf32> to vector<16x128xf32>
    %114 = arith.addf %111, %113 : vector<16x128xf32>
    %c0_35 = arith.constant 0 : index
    %c0_36 = arith.constant 0 : index
    %115 = vector.load %arg2[%c0_35, %c0_36] : memref<128x128xbf16, #tpu.memory_space<vmem>>, vector<128x128xbf16>
    %c0_37 = arith.constant 0 : index
    %c0_38 = arith.constant 0 : index
    %116 = vector.load %arg15[%c0_37, %c0_38] : memref<128x128xbf16, #tpu.memory_space<vmem>>, vector<128x128xbf16>
    %cst_39 = arith.constant dense<0.000000e+00> : vector<128x128xf32>
    %117 = tpu.matmul %115, %116, %cst_39 {dimension_numbers = #tpu.dot_dimension_numbers<[1], [0], [0], [1], [0, 0, 1, 1], [], []>} : vector<128x128xbf16>, vector<128x128xbf16>, vector<128x128xf32> -> vector<128x128xf32>
    %c0_40 = arith.constant 0 : index
    %c0_41 = arith.constant 0 : index
    %118 = vector.load %arg16[%c0_40, %c0_41] : memref<1x128xf32, #tpu.memory_space<vmem>>, vector<1x128xf32>
    %119 = vector.broadcast %118 : vector<1x128xf32> to vector<128x128xf32>
    %120 = arith.addf %117, %119 : vector<128x128xf32>
    %121 = arith.truncf %120 : vector<128x128xf32> to vector<128x128xbf16>
    %c0_42 = arith.constant 0 : index
    %c0_43 = arith.constant 0 : index
    %122 = vector.load %arg3[%c0_42, %c0_43] : memref<16x128xbf16, #tpu.memory_space<vmem>>, vector<16x128xbf16>
    %cst_44 = arith.constant dense<0.000000e+00> : vector<16x128xf32>
    %123 = tpu.matmul %122, %121, %cst_44 {dimension_numbers = #tpu.dot_dimension_numbers<[1], [0], [0], [1], [0, 0, 1, 1], [], []>} : vector<16x128xbf16>, vector<128x128xbf16>, vector<16x128xf32> -> vector<16x128xf32>
    %124 = arith.addf %123, %114 : vector<16x128xf32>
    %cst_45 = arith.constant 0.000000e+00 : f32
    %125 = vector.broadcast %cst_45 : f32 to vector<16x128xf32>
    %126 = arith.maximumf %124, %125 : vector<16x128xf32>
    %127 = arith.truncf %126 : vector<16x128xf32> to vector<16x128xbf16>
    %c0_46 = arith.constant 0 : index
    %c0_47 = arith.constant 0 : index
    %128 = vector.load %arg4[%c0_46, %c0_47] : memref<128x16xbf16, #tpu.memory_space<vmem>>, vector<128x16xbf16>
    %cst_48 = arith.constant dense<0.000000e+00> : vector<128x128xf32>
    %129 = tpu.matmul %128, %127, %cst_48 {dimension_numbers = #tpu.dot_dimension_numbers<[1], [0], [0], [1], [0, 0, 1, 1], [], []>} : vector<128x16xbf16>, vector<16x128xbf16>, vector<128x128xf32> -> vector<128x128xf32>
    %130 = arith.addf %120, %129 : vector<128x128xf32>
    %131 = arith.truncf %130 : vector<128x128xf32> to vector<128x128xbf16>
    %c0_49 = arith.constant 0 : index
    %c0_50 = arith.constant 0 : index
    %c0_51 = arith.constant 0 : index
    %132 = vector.load %arg17[%c0_49, %c0_50, %c0_51] : memref<2x128x128xbf16, #tpu.memory_space<vmem>>, vector<1x128x128xbf16>
    %133 = vector.shape_cast %132 : vector<1x128x128xbf16> to vector<128x128xbf16>
    %cst_52 = arith.constant dense<0.000000e+00> : vector<128x128xf32>
    %134 = tpu.matmul %131, %133, %cst_52 {dimension_numbers = #tpu.dot_dimension_numbers<[1], [0], [0], [1], [0, 0, 1, 1], [], []>} : vector<128x128xbf16>, vector<128x128xbf16>, vector<128x128xf32> -> vector<128x128xf32>
    %c0_53 = arith.constant 0 : index
    %c0_54 = arith.constant 0 : index
    %c0_55 = arith.constant 0 : index
    %135 = vector.load %arg18[%c0_53, %c0_54, %c0_55] : memref<2x1x128xf32, #tpu.memory_space<vmem>>, vector<1x1x128xf32>
    %136 = vector.shape_cast %135 : vector<1x1x128xf32> to vector<1x128xf32>
    %137 = vector.broadcast %136 : vector<1x128xf32> to vector<128x128xf32>
    %138 = arith.addf %134, %137 : vector<128x128xf32>
    %cst_56 = arith.constant 0.000000e+00 : f32
    %139 = vector.broadcast %cst_56 : f32 to vector<128x128xf32>
    %140 = arith.maximumf %138, %139 : vector<128x128xf32>
    %141 = arith.truncf %140 : vector<128x128xf32> to vector<128x128xbf16>
    %c0_57 = arith.constant 0 : index
    %c0_58 = arith.constant 0 : index
    %c0_59 = arith.constant 0 : index
    %142 = vector.load %arg19[%c0_57, %c0_58, %c0_59] : memref<2x128x128xbf16, #tpu.memory_space<vmem>>, vector<1x128x128xbf16>
    %143 = vector.shape_cast %142 : vector<1x128x128xbf16> to vector<128x128xbf16>
    %cst_60 = arith.constant dense<0.000000e+00> : vector<128x128xf32>
    %144 = tpu.matmul %141, %143, %cst_60 {dimension_numbers = #tpu.dot_dimension_numbers<[1], [0], [0], [1], [0, 0, 1, 1], [], []>} : vector<128x128xbf16>, vector<128x128xbf16>, vector<128x128xf32> -> vector<128x128xf32>
    %c0_61 = arith.constant 0 : index
    %c0_62 = arith.constant 0 : index
    %c0_63 = arith.constant 0 : index
    %145 = vector.load %arg20[%c0_61, %c0_62, %c0_63] : memref<2x1x128xf32, #tpu.memory_space<vmem>>, vector<1x1x128xf32>
    %146 = vector.shape_cast %145 : vector<1x1x128xf32> to vector<1x128xf32>
    %147 = vector.broadcast %146 : vector<1x128xf32> to vector<128x128xf32>
    %148 = arith.addf %144, %147 : vector<128x128xf32>
    %cst_64 = arith.constant 0.000000e+00 : f32
    %149 = vector.broadcast %cst_64 : f32 to vector<128x128xf32>
    %150 = arith.maximumf %148, %149 : vector<128x128xf32>
    %151 = arith.truncf %150 : vector<128x128xf32> to vector<128x128xbf16>
    %c0_65 = arith.constant 0 : index
    %c0_66 = arith.constant 0 : index
    %152 = vector.load %arg3[%c0_65, %c0_66] : memref<16x128xbf16, #tpu.memory_space<vmem>>, vector<16x128xbf16>
    %cst_67 = arith.constant dense<0.000000e+00> : vector<16x128xf32>
    %153 = tpu.matmul %152, %151, %cst_67 {dimension_numbers = #tpu.dot_dimension_numbers<[1], [0], [0], [1], [0, 0, 1, 1], [], []>} : vector<16x128xbf16>, vector<128x128xbf16>, vector<16x128xf32> -> vector<16x128xf32>
    %154 = arith.addf %153, %114 : vector<16x128xf32>
    %cst_68 = arith.constant 0.000000e+00 : f32
    %155 = vector.broadcast %cst_68 : f32 to vector<16x128xf32>
    %156 = arith.maximumf %154, %155 : vector<16x128xf32>
    %157 = arith.truncf %156 : vector<16x128xf32> to vector<16x128xbf16>
    %c0_69 = arith.constant 0 : index
    %c0_70 = arith.constant 0 : index
    %158 = vector.load %arg4[%c0_69, %c0_70] : memref<128x16xbf16, #tpu.memory_space<vmem>>, vector<128x16xbf16>
    %cst_71 = arith.constant dense<0.000000e+00> : vector<128x128xf32>
    %159 = tpu.matmul %158, %157, %cst_71 {dimension_numbers = #tpu.dot_dimension_numbers<[1], [0], [0], [1], [0, 0, 1, 1], [], []>} : vector<128x16xbf16>, vector<16x128xbf16>, vector<128x128xf32> -> vector<128x128xf32>
    %160 = arith.addf %150, %159 : vector<128x128xf32>
    %161 = arith.truncf %160 : vector<128x128xf32> to vector<128x128xbf16>
    %c1 = arith.constant 1 : index
    %c0_72 = arith.constant 0 : index
    %c0_73 = arith.constant 0 : index
    %162 = vector.load %arg17[%c1, %c0_72, %c0_73] : memref<2x128x128xbf16, #tpu.memory_space<vmem>>, vector<1x128x128xbf16>
    %163 = vector.shape_cast %162 : vector<1x128x128xbf16> to vector<128x128xbf16>
    %cst_74 = arith.constant dense<0.000000e+00> : vector<128x128xf32>
    %164 = tpu.matmul %161, %163, %cst_74 {dimension_numbers = #tpu.dot_dimension_numbers<[1], [0], [0], [1], [0, 0, 1, 1], [], []>} : vector<128x128xbf16>, vector<128x128xbf16>, vector<128x128xf32> -> vector<128x128xf32>
    %c1_75 = arith.constant 1 : index
    %c0_76 = arith.constant 0 : index
    %c0_77 = arith.constant 0 : index
    %165 = vector.load %arg18[%c1_75, %c0_76, %c0_77] : memref<2x1x128xf32, #tpu.memory_space<vmem>>, vector<1x1x128xf32>
    %166 = vector.shape_cast %165 : vector<1x1x128xf32> to vector<1x128xf32>
    %167 = vector.broadcast %166 : vector<1x128xf32> to vector<128x128xf32>
    %168 = arith.addf %164, %167 : vector<128x128xf32>
    %cst_78 = arith.constant 0.000000e+00 : f32
    %169 = vector.broadcast %cst_78 : f32 to vector<128x128xf32>
    %170 = arith.maximumf %168, %169 : vector<128x128xf32>
    %171 = arith.truncf %170 : vector<128x128xf32> to vector<128x128xbf16>
    %c1_79 = arith.constant 1 : index
    %c0_80 = arith.constant 0 : index
    %c0_81 = arith.constant 0 : index
    %172 = vector.load %arg19[%c1_79, %c0_80, %c0_81] : memref<2x128x128xbf16, #tpu.memory_space<vmem>>, vector<1x128x128xbf16>
    %173 = vector.shape_cast %172 : vector<1x128x128xbf16> to vector<128x128xbf16>
    %cst_82 = arith.constant dense<0.000000e+00> : vector<128x128xf32>
    %174 = tpu.matmul %171, %173, %cst_82 {dimension_numbers = #tpu.dot_dimension_numbers<[1], [0], [0], [1], [0, 0, 1, 1], [], []>} : vector<128x128xbf16>, vector<128x128xbf16>, vector<128x128xf32> -> vector<128x128xf32>
    %c1_83 = arith.constant 1 : index
    %c0_84 = arith.constant 0 : index
    %c0_85 = arith.constant 0 : index
    %175 = vector.load %arg20[%c1_83, %c0_84, %c0_85] : memref<2x1x128xf32, #tpu.memory_space<vmem>>, vector<1x1x128xf32>
    %176 = vector.shape_cast %175 : vector<1x1x128xf32> to vector<1x128xf32>
    %177 = vector.broadcast %176 : vector<1x128xf32> to vector<128x128xf32>
    %178 = arith.addf %174, %177 : vector<128x128xf32>
    %cst_86 = arith.constant 0.000000e+00 : f32
    %179 = vector.broadcast %cst_86 : f32 to vector<128x128xf32>
    %180 = arith.maximumf %178, %179 : vector<128x128xf32>
    %c0_87 = arith.constant 0 : index
    %c0_88 = arith.constant 0 : index
    %181 = vector.load %arg5[%c0_87, %c0_88] : memref<8x128xbf16, #tpu.memory_space<vmem>>, vector<8x128xbf16>
    %182 = arith.truncf %180 : vector<128x128xf32> to vector<128x128xbf16>
    %cst_89 = arith.constant dense<0.000000e+00> : vector<8x128xf32>
    %183 = tpu.matmul %181, %182, %cst_89 {dimension_numbers = #tpu.dot_dimension_numbers<[1], [0], [0], [1], [0, 0, 1, 1], [], []>} : vector<8x128xbf16>, vector<128x128xbf16>, vector<8x128xf32> -> vector<8x128xf32>
    %184 = arith.truncf %183 : vector<8x128xf32> to vector<8x128xbf16>
    %c0_90 = arith.constant 0 : index
    %c0_91 = arith.constant 0 : index
    %185 = vector.load %arg21[%c0_90, %c0_91] : memref<128x128xbf16, #tpu.memory_space<vmem>>, vector<128x128xbf16>
    %cst_92 = arith.constant dense<0.000000e+00> : vector<8x128xf32>
    %186 = tpu.matmul %184, %185, %cst_92 {dimension_numbers = #tpu.dot_dimension_numbers<[1], [0], [0], [1], [0, 0, 1, 1], [], []>} : vector<8x128xbf16>, vector<128x128xbf16>, vector<8x128xf32> -> vector<8x128xf32>
    %c0_93 = arith.constant 0 : index
    %c0_94 = arith.constant 0 : index
    %187 = vector.load %arg22[%c0_93, %c0_94] : memref<1x128xf32, #tpu.memory_space<vmem>>, vector<1x128xf32>
    %188 = vector.broadcast %187 : vector<1x128xf32> to vector<8x128xf32>
    %189 = arith.addf %186, %188 : vector<8x128xf32>
    %c0_95 = arith.constant 0 : index
    %c0_96 = arith.constant 0 : index
    %190 = vector.load %arg23[%c0_95, %c0_96] : memref<8x128xf32, #tpu.memory_space<vmem>>, vector<8x128xf32>
    tpu.vector_store %arg23[%c0_95, %c0_96], %189 {strides = array<i32>} : memref<8x128xf32, #tpu.memory_space<vmem>>, vector<8x128xf32>,
    return
  }
}

</mosaic_0001>

<llo_original>
// kernel: cyclenet_forward.1
$region0: #{cyclenet_forward.1}
  #allocation0 [shape = 'u32[]', space=smem, size = 0x4, offset = 0x4, fixed_abs, tag = 'smem constant byte address 0x4 - core index']
  #allocation1 [shape = 'u32[144,128]{1,0:T(1,128)}', space=vmem, size = 0x12000, scoped, tag = 'internal scratch']
  %s0 = inlined_call_operand.vmem [shape: f32[16,4], index: 0, kind: input, shape index: {}]
  %s1 = inlined_call_operand.vmem [shape: f32[16,1], index: 1, kind: input, shape index: {}]
  %s2 = inlined_call_operand.hbm [shape: bf16[128,128], index: 2, kind: input, shape index: {}]
  %s3 = inlined_call_operand.hbm [shape: bf16[16,128], index: 3, kind: input, shape index: {}]
  %s4 = inlined_call_operand.vmem [shape: bf16[128,16], index: 4, kind: input, shape index: {}]
  %s5 = inlined_call_operand.hbm [shape: bf16[8,128], index: 5, kind: input, shape index: {}]
  %s6 = inlined_call_operand.hbm [shape: f32[1,64], index: 6, kind: input, shape index: {}]
  %s7 = inlined_call_operand.hbm [shape: f32[1,64], index: 7, kind: input, shape index: {}]
  %s8 = inlined_call_operand.hbm [shape: bf16[64,128], index: 8, kind: input, shape index: {}]
  %s9 = inlined_call_operand.hbm [shape: f32[1,128], index: 9, kind: input, shape index: {}]
  %s10 = inlined_call_operand.hbm [shape: f32[1,128], index: 10, kind: input, shape index: {}]
  %s11 = inlined_call_operand.hbm [shape: bf16[128,128], index: 11, kind: input, shape index: {}]
  %s12 = inlined_call_operand.hbm [shape: f32[1,128], index: 12, kind: input, shape index: {}]
  %s13 = inlined_call_operand.hbm [shape: bf16[128,128], index: 13, kind: input, shape index: {}]
  %s14 = inlined_call_operand.hbm [shape: f32[1,128], index: 14, kind: input, shape index: {}]
  %s15 = inlined_call_operand.hbm [shape: bf16[128,128], index: 15, kind: input, shape index: {}]
  %s16 = inlined_call_operand.hbm [shape: f32[1,128], index: 16, kind: input, shape index: {}]
  %s17 = inlined_call_operand.vmem [shape: bf16[2,128,128], index: 17, kind: input, shape index: {}]
  %s18 = inlined_call_operand.hbm [shape: f32[2,1,128], index: 18, kind: input, shape index: {}]
  %s19 = inlined_call_operand.hbm [shape: bf16[2,128,128], index: 19, kind: input, shape index: {}]
  %s20 = inlined_call_operand.hbm [shape: f32[2,1,128], index: 20, kind: input, shape index: {}]
  %s21 = inlined_call_operand.vmem [shape: bf16[128,128], index: 21, kind: input, shape index: {}]
  %s22 = inlined_call_operand.hbm [shape: f32[1,128], index: 22, kind: input, shape index: {}]
  %s23 = inlined_call_operand.vmem [shape: f32[8,128], index: 23, kind: output, shape index: {}]
  %s24 = sld [smem:[#allocation0]]
  $region174: #{cyclenet_forward.1} parent=0
    _
  %s26 = ssub.s32 1, %s24
  %s27 = scalar_select 0, %s26, %s24
  $region1: #{cyclenet_forward.1} parent=0
    #allocation2 [shape = 'u8[32768]{0}', space=vmem, size = 0x8000, scoped, tag = 'input window, operand 2, single buffered']
    #allocation3 [shape = 's32[1]{0}', space=sflag, size = 0x4, scoped, tag = 'scoped memory for cyclenet_forward.1']
    #allocation4 [shape = 'u8[4096]{0}', space=vmem, size = 0x1000, scoped, tag = 'input window, operand 3, single buffered']
    #allocation5 [shape = 's32[1]{0}', space=sflag, size = 0x4, scoped, tag = 'scoped memory for cyclenet_forward.1']
    #allocation6 [shape = 'u8[2048]{0}', space=vmem, size = 0x800, scoped, tag = 'input window, operand 5, single buffered']
    #allocation7 [shape = 'u8[512]{0}', space=vmem, size = 0x400, scoped, tag = 'input window, operand 6, single buffered']
    #allocation8 [shape = 's32[1]{0}', space=sflag, size = 0x4, scoped, tag = 'scoped memory for cyclenet_forward.1']
    #allocation9 [shape = 'u8[512]{0}', space=vmem, size = 0x400, scoped, tag = 'input window, operand 7, single buffered']
    #allocation10 [shape = 'u8[16384]{0}', space=vmem, size = 0x4000, scoped, tag = 'input window, operand 8, single buffered']
    #allocation11 [shape = 's32[1]{0}', space=sflag, size = 0x4, scoped, tag = 'scoped memory for cyclenet_forward.1']
    #allocation12 [shape = 'u8[512]{0}', space=vmem, size = 0x400, scoped, tag = 'input window, operand 9, single buffered']
    #allocation13 [shape = 'u8[512]{0}', space=vmem, size = 0x400, scoped, tag = 'input window, operand 10, single buffered']
    #allocation14 [shape = 's32[1]{0}', space=sflag, size = 0x4, scoped, tag = 'scoped memory for cyclenet_forward.1']
    #allocation15 [shape = 'u8[32768]{0}', space=vmem, size = 0x8000, scoped, tag = 'input window, operand 11, single buffered']
    #allocation16 [shape = 'u8[512]{0}', space=vmem, size = 0x400, scoped, tag = 'input window, operand 12, single buffered']
    #allocation17 [shape = 's32[1]{0}', space=sflag, size = 0x4, scoped, tag = 'scoped memory for cyclenet_forward.1']
    #allocation18 [shape = 'u8[32768]{0}', space=vmem, size = 0x8000, scoped, tag = 'input window, operand 13, single buffered']
    #allocation19 [shape = 'u8[512]{0}', space=vmem, size = 0x400, scoped, tag = 'input window, operand 14, single buffered']
    #allocation20 [shape = 's32[1]{0}', space=sflag, size = 0x4, scoped, tag = 'scoped memory for cyclenet_forward.1']
    #allocation21 [shape = 'u8[32768]{0}', space=vmem, size = 0x8000, scoped, tag = 'input window, operand 15, single buffered']
    #allocation22 [shape = 'u8[512]{0}', space=vmem, size = 0x400, scoped, tag = 'input window, operand 16, single buffered']
    #allocation23 [shape = 's32[1]{0}', space=sflag, size = 0x4, scoped, tag = 'scoped memory for cyclenet_forward.1']
    #allocation24 [shape = 'u8[1024]{0}', space=vmem, size = 0x400, scoped, tag = 'input window, operand 18, single buffered']
    #allocation25 [shape = 'u8[65536]{0}', space=vmem, size = 0x10000, scoped, tag = 'input window, operand 19, single buffered']
    #allocation26 [shape = 's32[1]{0}', space=sflag, size = 0x4, scoped, tag = 'scoped memory for cyclenet_forward.1']
    #allocation27 [shape = 'u8[1024]{0}', space=vmem, size = 0x400, scoped, tag = 'input window, operand 20, single buffered']
    #allocation28 [shape = 'u8[512]{0}', space=vmem, size = 0x400, scoped, tag = 'input window, operand 22, single buffered']
    #allocation29 [shape = 's32[1]{0}', space=sflag, size = 0x4, scoped, tag = 'scoped memory for cyclenet_forward.1']
    %28 = vsyncpa [#allocation3], 0
    %29 = vsyncpa [#allocation5], 0
    %30 = vsyncpa [#allocation8], 0
    %31 = vsyncpa [#allocation11], 0
    %32 = vsyncpa [#allocation14], 0
    %33 = vsyncpa [#allocation17], 0
    %34 = vsyncpa [#allocation20], 0
    %35 = vsyncpa [#allocation23], 0
    %36 = vsyncpa [#allocation26], 0
    %37 = vsyncpa [#allocation29], 0
    // Predicated region
    $region2: #{cyclenet_forward.1} parent=1 // pred_check
      _
    $region3: #{cyclenet_forward.1} parent=1 // pred_check_branch
      %39 = sbr.rel (0) target = $region5
    $region4: #{cyclenet_forward.1} parent=1 // pred_region
      _
    $region5: #{cyclenet_forward.1} parent=1 // pred_fallthru
      _
    // Predicated region
    $region6: #{cyclenet_forward.1} parent=1 // pred_check
      _
    $region7: #{cyclenet_forward.1} parent=1 // pred_check_branch
      %41 = sbr.rel (0) target = $region9
    $region8: #{cyclenet_forward.1} parent=1 // pred_region
      _
    $region9: #{cyclenet_forward.1} parent=1 // pred_fallthru
      _
    // Predicated region
    $region10: #{cyclenet_forward.1} parent=1 // pred_check
      _
    $region11: #{cyclenet_forward.1} parent=1 // pred_check_branch
      %43 = sbr.rel (0) target = $region13
    $region12: #{cyclenet_forward.1} parent=1 // pred_region
      %s45 = ssub.s32 1024, 1024
      %46 = vsyncadd [#allocation3], %s45
      %s47 = sshll.u32 [#allocation2], 4
      %s48 = int_to_ptr.vmem [resolvable:$true] %s47
      %53 = dma.hbm_to_vmem [thread:$0]  %s2, 1024, %s48, [#allocation3], 64, 64, 4
    $region13: #{cyclenet_forward.1} parent=1 // pred_fallthru
      _
    // Predicated region
    $region14: #{cyclenet_forward.1} parent=1 // pred_check
      _
    $region15: #{cyclenet_forward.1} parent=1 // pred_check_branch
      %55 = sbr.rel (0) target = $region17
    $region16: #{cyclenet_forward.1} parent=1 // pred_region
      %s57 = ssub.s32 128, 128
      %58 = vsyncadd [#allocation5], %s57
      %s59 = sshll.u32 [#allocation4], 4
      %s60 = int_to_ptr.vmem [resolvable:$true] %s59
      %65 = dma.hbm_to_vmem [thread:$0]  %s3, 128, %s60, [#allocation5], 64, 64, 4
    $region17: #{cyclenet_forward.1} parent=1 // pred_fallthru
      _
    // Predicated region
    $region18: #{cyclenet_forward.1} parent=1 // pred_check
      _
    $region19: #{cyclenet_forward.1} parent=1 // pred_check_branch
      %67 = sbr.rel (0) target = $region21
    $region20: #{cyclenet_forward.1} parent=1 // pred_region
      _
    $region21: #{cyclenet_forward.1} parent=1 // pred_fallthru
      _
    // Predicated region
    $region22: #{cyclenet_forward.1} parent=1 // pred_check
      _
    $region23: #{cyclenet_forward.1} parent=1 // pred_check_branch
      %69 = sbr.rel (0) target = $region25
    $region24: #{cyclenet_forward.1} parent=1 // pred_region
      %s71 = ssub.s32 64, 64
      %72 = vsyncadd [#allocation5], %s71
      %s74 = sshll.u32 [#allocation6], 4
      %s75 = int_to_ptr.vmem [resolvable:$true] %s74
      %77 = dma.hbm_to_vmem [thread:$0]  %s5, 64, %s75, [#allocation5]
    $region25: #{cyclenet_forward.1} parent=1 // pred_fallthru
      _
    // Predicated region
    $region26: #{cyclenet_forward.1} parent=1 // pred_check
      _
    $region27: #{cyclenet_forward.1} parent=1 // pred_check_branch
      %79 = sbr.rel (0) target = $region29
    $region28: #{cyclenet_forward.1} parent=1 // pred_region
      %s81 = ssub.s32 16, 16
      %82 = vsyncadd [#allocation8], %s81
      %s84 = sshll.u32 [#allocation7], 4
      %s85 = int_to_ptr.vmem [resolvable:$true] %s84
      %87 = dma.hbm_to_vmem [thread:$0]  %s6, 16, %s85, [#allocation8]
    $region29: #{cyclenet_forward.1} parent=1 // pred_fallthru
      _
    // Predicated region
    $region30: #{cyclenet_forward.1} parent=1 // pred_check
      _
    $region31: #{cyclenet_forward.1} parent=1 // pred_check_branch
      %89 = sbr.rel (0) target = $region33
    $region32: #{cyclenet_forward.1} parent=1 // pred_region
      %s91 = ssub.s32 16, 16
      %92 = vsyncadd [#allocation8], %s91
      %s94 = sshll.u32 [#allocation9], 4
      %s95 = int_to_ptr.vmem [resolvable:$true] %s94
      %97 = dma.hbm_to_vmem [thread:$0]  %s7, 16, %s95, [#allocation8]
    $region33: #{cyclenet_forward.1} parent=1 // pred_fallthru
      _
    // Predicated region
    $region34: #{cyclenet_forward.1} parent=1 // pred_check
      _
    $region35: #{cyclenet_forward.1} parent=1 // pred_check_branch
      %99 = sbr.rel (0) target = $region37
    $region36: #{cyclenet_forward.1} parent=1 // pred_region
      %s101 = ssub.s32 512, 512
      %102 = vsyncadd [#allocation11], %s101
      %s103 = sshll.u32 [#allocation10], 4
      %s104 = int_to_ptr.vmem [resolvable:$true] %s103
      %109 = dma.hbm_to_vmem [thread:$0]  %s8, 512, %s104, [#allocation11], 64, 64, 4
    $region37: #{cyclenet_forward.1} parent=1 // pred_fallthru
      _
    // Predicated region
    $region38: #{cyclenet_forward.1} parent=1 // pred_check
      _
    $region39: #{cyclenet_forward.1} parent=1 // pred_check_branch
      %111 = sbr.rel (0) target = $region41
    $region40: #{cyclenet_forward.1} parent=1 // pred_region
      %s113 = ssub.s32 16, 16
      %114 = vsyncadd [#allocation11], %s113
      %s116 = sshll.u32 [#allocation12], 4
      %s117 = int_to_ptr.vmem [resolvable:$true] %s116
      %119 = dma.hbm_to_vmem [thread:$0]  %s9, 16, %s117, [#allocation11]
    $region41: #{cyclenet_forward.1} parent=1 // pred_fallthru
      _
    // Predicated region
    $region42: #{cyclenet_forward.1} parent=1 // pred_check
      _
    $region43: #{cyclenet_forward.1} parent=1 // pred_check_branch
      %121 = sbr.rel (0) target = $region45
    $region44: #{cyclenet_forward.1} parent=1 // pred_region
      %s123 = ssub.s32 16, 16
      %124 = vsyncadd [#allocation14], %s123
      %s126 = sshll.u32 [#allocation13], 4
      %s127 = int_to_ptr.vmem [resolvable:$true] %s126
      %129 = dma.hbm_to_vmem [thread:$0]  %s10, 16, %s127, [#allocation14]
    $region45: #{cyclenet_forward.1} parent=1 // pred_fallthru
      _
    // Predicated region
    $region46: #{cyclenet_forward.1} parent=1 // pred_check
      _
    $region47: #{cyclenet_forward.1} parent=1 // pred_check_branch
      %131 = sbr.rel (0) target = $region49
    $region48: #{cyclenet_forward.1} parent=1 // pred_region
      %s133 = ssub.s32 1024, 1024
      %134 = vsyncadd [#allocation14], %s133
      %s135 = sshll.u32 [#allocation15], 4
      %s136 = int_to_ptr.vmem [resolvable:$true] %s135
      %141 = dma.hbm_to_vmem [thread:$0]  %s11, 1024, %s136, [#allocation14], 64, 64, 4
    $region49: #{cyclenet_forward.1} parent=1 // pred_fallthru
      _
    // Predicated region
    $region50: #{cyclenet_forward.1} parent=1 // pred_check
      _
    $region51: #{cyclenet_forward.1} parent=1 // pred_check_branch
      %143 = sbr.rel (0) target = $region53
    $region52: #{cyclenet_forward.1} parent=1 // pred_region
      %s145 = ssub.s32 16, 16
      %146 = vsyncadd [#allocation17], %s145
      %s148 = sshll.u32 [#allocation16], 4
      %s149 = int_to_ptr.vmem [resolvable:$true] %s148
      %151 = dma.hbm_to_vmem [thread:$0]  %s12, 16, %s149, [#allocation17]
    $region53: #{cyclenet_forward.1} parent=1 // pred_fallthru
      _
    // Predicated region
    $region54: #{cyclenet_forward.1} parent=1 // pred_check
      _
    $region55: #{cyclenet_forward.1} parent=1 // pred_check_branch
      %153 = sbr.rel (0) target = $region57
    $region56: #{cyclenet_forward.1} parent=1 // pred_region
      %s155 = ssub.s32 1024, 1024
      %156 = vsyncadd [#allocation17], %s155
      %s157 = sshll.u32 [#allocation18], 4
      %s158 = int_to_ptr.vmem [resolvable:$true] %s157
      %163 = dma.hbm_to_vmem [thread:$0]  %s13, 1024, %s158, [#allocation17], 64, 64, 4
    $region57: #{cyclenet_forward.1} parent=1 // pred_fallthru
      _
    // Predicated region
    $region58: #{cyclenet_forward.1} parent=1 // pred_check
      _
    $region59: #{cyclenet_forward.1} parent=1 // pred_check_branch
      %165 = sbr.rel (0) target = $region61
    $region60: #{cyclenet_forward.1} parent=1 // pred_region
      %s167 = ssub.s32 16, 16
      %168 = vsyncadd [#allocation20], %s167
      %s170 = sshll.u32 [#allocation19], 4
      %s171 = int_to_ptr.vmem [resolvable:$true] %s170
      %173 = dma.hbm_to_vmem [thread:$0]  %s14, 16, %s171, [#allocation20]
    $region61: #{cyclenet_forward.1} parent=1 // pred_fallthru
      _
    // Predicated region
    $region62: #{cyclenet_forward.1} parent=1 // pred_check
      _
    $region63: #{cyclenet_forward.1} parent=1 // pred_check_branch
      %175 = sbr.rel (0) target = $region65
    $region64: #{cyclenet_forward.1} parent=1 // pred_region
      %s177 = ssub.s32 1024, 1024
      %178 = vsyncadd [#allocation20], %s177
      %s179 = sshll.u32 [#allocation21], 4
      %s180 = int_to_ptr.vmem [resolvable:$true] %s179
      %185 = dma.hbm_to_vmem [thread:$0]  %s15, 1024, %s180, [#allocation20], 64, 64, 4
    $region65: #{cyclenet_forward.1} parent=1 // pred_fallthru
      _
    // Predicated region
    $region66: #{cyclenet_forward.1} parent=1 // pred_check
      _
    $region67: #{cyclenet_forward.1} parent=1 // pred_check_branch
      %187 = sbr.rel (0) target = $region69
    $region68: #{cyclenet_forward.1} parent=1 // pred_region
      %s189 = ssub.s32 16, 16
      %190 = vsyncadd [#allocation23], %s189
      %s192 = sshll.u32 [#allocation22], 4
      %s193 = int_to_ptr.vmem [resolvable:$true] %s192
      %195 = dma.hbm_to_vmem [thread:$0]  %s16, 16, %s193, [#allocation23]
    $region69: #{cyclenet_forward.1} parent=1 // pred_fallthru
      _
    // Predicated region
    $region70: #{cyclenet_forward.1} parent=1 // pred_check
      _
    $region71: #{cyclenet_forward.1} parent=1 // pred_check_branch
      %197 = sbr.rel (0) target = $region73
    $region72: #{cyclenet_forward.1} parent=1 // pred_region
      _
    $region73: #{cyclenet_forward.1} parent=1 // pred_fallthru
      _
    // Predicated region
    $region74: #{cyclenet_forward.1} parent=1 // pred_check
      _
    $region75: #{cyclenet_forward.1} parent=1 // pred_check_branch
      %199 = sbr.rel (0) target = $region77
    $region76: #{cyclenet_forward.1} parent=1 // pred_region
      %s201 = ssub.s32 32, 32
      %202 = vsyncadd [#allocation23], %s201
      %s203 = sshll.u32 [#allocation24], 4
      %s204 = int_to_ptr.vmem [resolvable:$true] %s203
      %209 = dma.hbm_to_vmem [thread:$0]  %s18, 32, %s204, [#allocation23], 16, 16, 1
    $region77: #{cyclenet_forward.1} parent=1 // pred_fallthru
      _
    // Predicated region
    $region78: #{cyclenet_forward.1} parent=1 // pred_check
      _
    $region79: #{cyclenet_forward.1} parent=1 // pred_check_branch
      %211 = sbr.rel (0) target = $region81
    $region80: #{cyclenet_forward.1} parent=1 // pred_region
      %s213 = ssub.s32 2048, 2048
      %214 = vsyncadd [#allocation26], %s213
      %s215 = sshll.u32 [#allocation25], 4
      %s216 = int_to_ptr.vmem [resolvable:$true] %s215
      %221 = dma.hbm_to_vmem [thread:$0]  %s19, 2048, %s216, [#allocation26], 64, 64, 4
    $region81: #{cyclenet_forward.1} parent=1 // pred_fallthru
      _
    // Predicated region
    $region82: #{cyclenet_forward.1} parent=1 // pred_check
      _
    $region83: #{cyclenet_forward.1} parent=1 // pred_check_branch
      %223 = sbr.rel (0) target = $region85
    $region84: #{cyclenet_forward.1} parent=1 // pred_region
      %s225 = ssub.s32 32, 32
      %226 = vsyncadd [#allocation26], %s225
      %s227 = sshll.u32 [#allocation27], 4
      %s228 = int_to_ptr.vmem [resolvable:$true] %s227
      %233 = dma.hbm_to_vmem [thread:$0]  %s20, 32, %s228, [#allocation26], 16, 16, 1
    $region85: #{cyclenet_forward.1} parent=1 // pred_fallthru
      _
    // Predicated region
    $region86: #{cyclenet_forward.1} parent=1 // pred_check
      _
    $region87: #{cyclenet_forward.1} parent=1 // pred_check_branch
      %235 = sbr.rel (0) target = $region89
    $region88: #{cyclenet_forward.1} parent=1 // pred_region
      _
    $region89: #{cyclenet_forward.1} parent=1 // pred_fallthru
      _
    // Predicated region
    $region90: #{cyclenet_forward.1} parent=1 // pred_check
      _
    $region91: #{cyclenet_forward.1} parent=1 // pred_check_branch
      %237 = sbr.rel (0) target = $region93
    $region92: #{cyclenet_forward.1} parent=1 // pred_region
      %s239 = ssub.s32 16, 16
      %240 = vsyncadd [#allocation29], %s239
      %s242 = sshll.u32 [#allocation28], 4
      %s243 = int_to_ptr.vmem [resolvable:$true] %s242
      %245 = dma.hbm_to_vmem [thread:$0]  %s22, 16, %s243, [#allocation29]
    $region93: #{cyclenet_forward.1} parent=1 // pred_fallthru
      _
    // Predicated region
    $region94: #{cyclenet_forward.1} parent=1 // pred_check
      _
    $region95: #{cyclenet_forward.1} parent=1 // pred_check_branch
      %247 = sbr.rel (0) target = $region97
    $region96: #{cyclenet_forward.1} parent=1 // pred_region
      %248 = dma.done [#allocation3], 1024
    $region97: #{cyclenet_forward.1} parent=1 // pred_fallthru
      _
    // Predicated region
    $region98: #{cyclenet_forward.1} parent=1 // pred_check
      _
    $region99: #{cyclenet_forward.1} parent=1 // pred_check_branch
      %250 = sbr.rel (0) target = $region101
    $region100: #{cyclenet_forward.1} parent=1 // pred_region
      %251 = dma.done [#allocation5], 128
    $region101: #{cyclenet_forward.1} parent=1 // pred_fallthru
      _
    // Predicated region
    $region102: #{cyclenet_forward.1} parent=1 // pred_check
      _
    $region103: #{cyclenet_forward.1} parent=1 // pred_check_branch
      %253 = sbr.rel (0) target = $region105
    $region104: #{cyclenet_forward.1} parent=1 // pred_region
      %254 = dma.done [#allocation5], 64
    $region105: #{cyclenet_forward.1} parent=1 // pred_fallthru
      _
    // Predicated region
    $region106: #{cyclenet_forward.1} parent=1 // pred_check
      _
    $region107: #{cyclenet_forward.1} parent=1 // pred_check_branch
      %256 = sbr.rel (0) target = $region109
    $region108: #{cyclenet_forward.1} parent=1 // pred_region
      %257 = dma.done [#allocation8], 16
    $region109: #{cyclenet_forward.1} parent=1 // pred_fallthru
      _
    // Predicated region
    $region110: #{cyclenet_forward.1} parent=1 // pred_check
      _
    $region111: #{cyclenet_forward.1} parent=1 // pred_check_branch
      %259 = sbr.rel (0) target = $region113
    $region112: #{cyclenet_forward.1} parent=1 // pred_region
      %260 = dma.done [#allocation8], 16
    $region113: #{cyclenet_forward.1} parent=1 // pred_fallthru
      _
    // Predicated region
    $region114: #{cyclenet_forward.1} parent=1 // pred_check
      _
    $region115: #{cyclenet_forward.1} parent=1 // pred_check_branch
      %262 = sbr.rel (0) target = $region117
    $region116: #{cyclenet_forward.1} parent=1 // pred_region
      %263 = dma.done [#allocation11], 512
    $region117: #{cyclenet_forward.1} parent=1 // pred_fallthru
      _
    // Predicated region
    $region118: #{cyclenet_forward.1} parent=1 // pred_check
      _
    $region119: #{cyclenet_forward.1} parent=1 // pred_check_branch
      %265 = sbr.rel (0) target = $region121
    $region120: #{cyclenet_forward.1} parent=1 // pred_region
      %266 = dma.done [#allocation11], 16
    $region121: #{cyclenet_forward.1} parent=1 // pred_fallthru
      _
    // Predicated region
    $region122: #{cyclenet_forward.1} parent=1 // pred_check
      _
    $region123: #{cyclenet_forward.1} parent=1 // pred_check_branch
      %268 = sbr.rel (0) target = $region125
    $region124: #{cyclenet_forward.1} parent=1 // pred_region
      %269 = dma.done [#allocation14], 16
    $region125: #{cyclenet_forward.1} parent=1 // pred_fallthru
      _
    // Predicated region
    $region126: #{cyclenet_forward.1} parent=1 // pred_check
      _
    $region127: #{cyclenet_forward.1} parent=1 // pred_check_branch
      %271 = sbr.rel (0) target = $region129
    $region128: #{cyclenet_forward.1} parent=1 // pred_region
      %272 = dma.done [#allocation14], 1024
    $region129: #{cyclenet_forward.1} parent=1 // pred_fallthru
      _
    // Predicated region
    $region130: #{cyclenet_forward.1} parent=1 // pred_check
      _
    $region131: #{cyclenet_forward.1} parent=1 // pred_check_branch
      %274 = sbr.rel (0) target = $region133
    $region132: #{cyclenet_forward.1} parent=1 // pred_region
      %275 = dma.done [#allocation17], 16
    $region133: #{cyclenet_forward.1} parent=1 // pred_fallthru
      _
    // Predicated region
    $region134: #{cyclenet_forward.1} parent=1 // pred_check
      _
    $region135: #{cyclenet_forward.1} parent=1 // pred_check_branch
      %277 = sbr.rel (0) target = $region137
    $region136: #{cyclenet_forward.1} parent=1 // pred_region
      %278 = dma.done [#allocation17], 1024
    $region137: #{cyclenet_forward.1} parent=1 // pred_fallthru
      _
    // Predicated region
    $region138: #{cyclenet_forward.1} parent=1 // pred_check
      _
    $region139: #{cyclenet_forward.1} parent=1 // pred_check_branch
      %280 = sbr.rel (0) target = $region141
    $region140: #{cyclenet_forward.1} parent=1 // pred_region
      %281 = dma.done [#allocation20], 16
    $region141: #{cyclenet_forward.1} parent=1 // pred_fallthru
      _
    // Predicated region
    $region142: #{cyclenet_forward.1} parent=1 // pred_check
      _
    $region143: #{cyclenet_forward.1} parent=1 // pred_check_branch
      %283 = sbr.rel (0) target = $region145
    $region144: #{cyclenet_forward.1} parent=1 // pred_region
      %284 = dma.done [#allocation20], 1024
    $region145: #{cyclenet_forward.1} parent=1 // pred_fallthru
      _
    // Predicated region
    $region146: #{cyclenet_forward.1} parent=1 // pred_check
      _
    $region147: #{cyclenet_forward.1} parent=1 // pred_check_branch
      %286 = sbr.rel (0) target = $region149
    $region148: #{cyclenet_forward.1} parent=1 // pred_region
      %287 = dma.done [#allocation23], 16
    $region149: #{cyclenet_forward.1} parent=1 // pred_fallthru
      _
    // Predicated region
    $region150: #{cyclenet_forward.1} parent=1 // pred_check
      _
    $region151: #{cyclenet_forward.1} parent=1 // pred_check_branch
      %289 = sbr.rel (0) target = $region153
    $region152: #{cyclenet_forward.1} parent=1 // pred_region
      %290 = dma.done [#allocation23], 32
    $region153: #{cyclenet_forward.1} parent=1 // pred_fallthru
      _
    // Predicated region
    $region154: #{cyclenet_forward.1} parent=1 // pred_check
      _
    $region155: #{cyclenet_forward.1} parent=1 // pred_check_branch
      %292 = sbr.rel (0) target = $region157
    $region156: #{cyclenet_forward.1} parent=1 // pred_region
      %293 = dma.done [#allocation26], 2048
    $region157: #{cyclenet_forward.1} parent=1 // pred_fallthru
      _
    // Predicated region
    $region158: #{cyclenet_forward.1} parent=1 // pred_check
      _
    $region159: #{cyclenet_forward.1} parent=1 // pred_check_branch
      %295 = sbr.rel (0) target = $region161
    $region160: #{cyclenet_forward.1} parent=1 // pred_region
      %296 = dma.done [#allocation26], 32
    $region161: #{cyclenet_forward.1} parent=1 // pred_fallthru
      _
    // Predicated region
    $region162: #{cyclenet_forward.1} parent=1 // pred_check
      _
    $region163: #{cyclenet_forward.1} parent=1 // pred_check_branch
      %298 = sbr.rel (0) target = $region165
    $region164: #{cyclenet_forward.1} parent=1 // pred_region
      %299 = dma.done [#allocation29], 16
    $region165: #{cyclenet_forward.1} parent=1 // pred_fallthru
      _
    %v301 = vld [vmem:[%s1] sm:$0xff]
    %v302 = vld [vmem:[%s1 + $0x8] sm:$0xff]
    %v303 = vld [vmem:[#allocation7] sm:$0x1]
    %305 = vset.pattern.permute.xlu0 0
    %306 = vperm.xlu0 %305, %v301
    %v307 = vpop.permute.xlu0 %306
    %310 = vset.pattern.permute.xlu0 0
    %311 = vperm.xlu0 %310, %v302
    %v312 = vpop.permute.xlu0 %311
    %v315 = vlaneseq
    %v316 = vshrl.u32 %v315, 7
    %v317 = vsub.s32 0, %v316
    %v318 = vrot.slane %v303, %v317
    %v320 = vmul.f32 %v307, %v318
    %v321 = vmul.f32 %v312, %v318
    %v322 = vld [vmem:[#allocation9] sm:$0x1]
    %v324 = vlaneseq
    %v325 = vshrl.u32 %v324, 7
    %v326 = vsub.s32 0, %v325
    %v327 = vrot.slane %v322, %v326
    %v329 = vadd.f32 %v320, %v327
    %v330 = vadd.f32 %v321, %v327
    %v331 = vmax.f32 %v329, 0.0
    %v332 = vmax.f32 %v330, 0.0
    %v333 = vpack.c.bf16 %v332, %v331
    %v334 = vld [vmem:[#allocation10] sm:$0xf]
    %v335 = vld [vmem:[#allocation10 + $0x4] sm:$0xf]
    %v336 = vld [vmem:[#allocation10 + $0x8] sm:$0xf]
    %v337 = vld [vmem:[#allocation10 + $0xc] sm:$0xf]
    %v338 = vld [vmem:[#allocation10 + $0x10] sm:$0xf]
    %v339 = vld [vmem:[#allocation10 + $0x14] sm:$0xf]
    %v340 = vld [vmem:[#allocation10 + $0x18] sm:$0xf]
    %v341 = vld [vmem:[#allocation10 + $0x1c] sm:$0xf]
    %v342 = vld [vmem:[#allocation12] sm:$0x1]
    %v344 = vlaneseq
    %v345 = vshrl.u32 %v344, 7
    %v346 = vsub.s32 0, %v345
    %v347 = vrot.slane %v342, %v346
    %v357 = vunpack.c.l.b16 %v334
    %v358 = vunpack.c.l.b16 %v335
    %v359 = vunpack.c.l.b16 %v336
    %v360 = vunpack.c.l.b16 %v337
    %v361 = vunpack.c.l.b16 %v338
    %v362 = vunpack.c.l.b16 %v339
    %v363 = vunpack.c.l.b16 %v340
    %v364 = vunpack.c.l.b16 %v341
    %v365 = vpack.c.b16 %v358, %v357
    %v366 = vpack.c.b16 %v360, %v359
    %v367 = vpack.c.b16 %v362, %v361
    %v368 = vpack.c.b16 %v364, %v363
    %vm373 = vcmask 523264
    %v375 = vsel %vm373, %v333, 0
    %377 = vmatprep.subr.bf16.mxu0 0
    %378 = vmatpush1.bf16.msra.mxu0 %v365
    %379 = vmatprep.subr.bf16.mxu0 0
    %380 = vmatpush1.bf16.msra.mxu0 %v366
    %381 = vmatprep.subr.bf16.mxu0 0
    %382 = vmatpush1.bf16.msra.mxu0 %v367
    %383 = vmatprep.subr.bf16.mxu0 0
    %384 = vmatpush1.bf16.msra.mxu0 %v368
    %385 = vmatprep.subr.bf16.mxu0 0
    %386 = vmatpush1.bf16.msra.mxu0 0
    %387 = vmatprep.subr.bf16.mxu0 0
    %388 = vmatpush1.bf16.msra.mxu0 0
    %389 = vmatprep.subr.bf16.mxu0 0
    %390 = vmatpush1.bf16.msra.mxu0 0
    %391 = vmatprep.subr.bf16.mxu0 0
    %392 = vmatpush1.bf16.msra.mxu0 0
    %393 = vmatprep.subr.bf16.mxu0 0
    %394 = vmatpush1.bf16.msra.mxu0 0
    %395 = vmatprep.subr.bf16.mxu0 0
    %396 = vmatpush1.bf16.msra.mxu0 0
    %397 = vmatprep.subr.bf16.mxu0 0
    %398 = vmatpush1.bf16.msra.mxu0 0
    %399 = vmatprep.subr.bf16.mxu0 0
    %400 = vmatpush1.bf16.msra.mxu0 0
    %401 = vmatprep.subr.bf16.mxu0 0
    %402 = vmatpush1.bf16.msra.mxu0 0
    %403 = vmatprep.subr.bf16.mxu0 0
    %404 = vmatpush1.bf16.msra.mxu0 0
    %405 = vmatprep.subr.bf16.mxu0 0
    %406 = vmatpush1.bf16.msra.mxu0 0
    %407 = vmatprep.subr.bf16.mxu0 0
    %408 = vmatpush1.bf16.msra.mxu0 0
    %409 = vmatprep.mubr.bf16.mxu0 0
    %410 = vmatmul.mubr.bf16.gmra.mrb[0].mxu0 %v375
    %v411 = vpop.f32.mrb[0].mxu0
    %v412 = vadd.f32 %v347, %v411
    %v413 = vpop.f32.mrb[0].mxu0
    %v414 = vpop.f32.mrb[0].mxu0
    %v415 = vadd.f32 %v347, %v414
    %v416 = vpop.f32.mrb[0].mxu0
    %417 = vdwg.mxu0
    %v418 = vld [vmem:[%s0] sm:$0xff]
    %v419 = vld [vmem:[%s0 + $0x8] sm:$0xff]
    %v420 = vld [vmem:[#allocation13] sm:$0x1]
    %422 = vset.pattern.permute.xlu0 0
    %423 = vperm.xlu0 %422, %v418
    %v424 = vpop.permute.xlu0 %423
    %v427 = vlaneseq
    %v428 = vshrl.u32 %v427, 7
    %v429 = vsub.s32 0, %v428
    %v430 = vrot.slane %v420, %v429
    %v432 = vmul.f32 %v424, %v430
    %v433 = vlaneseq
    %v434 = vshrl.u32 %v433, 7
    %v435 = vsub.s32 0, %v434
    %v436 = vrot.slane %v412, %v435
    %v437 = vadd.f32 %v436, %v432
    %v438 = vmax.f32 %v437, 0.0
    %v439 = vadd.f32 %v438, 0.0
    %440 = vset.pattern.permute.xlu0 1
    %441 = vperm.xlu0 %440, %v418
    %v442 = vpop.permute.xlu0 %441
    %v444 = vmul.f32 %v442, %v430
    %v445 = vlaneseq
    %v446 = vshrl.u32 %v445, 7
    %v447 = vsub.s32 1, %v446
    %v448 = vrot.slane %v412, %v447
    %v449 = vadd.f32 %v448, %v444
    %v450 = vmax.f32 %v449, 0.0
    %v451 = vadd.f32 %v439, %v450
    %452 = vset.pattern.permute.xlu0 2
    %453 = vperm.xlu0 %452, %v418
    %v454 = vpop.permute.xlu0 %453
    %v456 = vmul.f32 %v454, %v430
    %v457 = vlaneseq
    %v458 = vshrl.u32 %v457, 7
    %v459 = vsub.s32 2, %v458
    %v460 = vrot.slane %v412, %v459
    %v461 = vadd.f32 %v460, %v456
    %v462 = vmax.f32 %v461, 0.0
    %v463 = vadd.f32 %v451, %v462
    %464 = vset.pattern.permute.xlu0 3
    %465 = vperm.xlu0 %464, %v418
    %v466 = vpop.permute.xlu0 %465
    %v468 = vmul.f32 %v466, %v430
    %v469 = vlaneseq
    %v470 = vshrl.u32 %v469, 7
    %v471 = vsub.s32 3, %v470
    %v472 = vrot.slane %v412, %v471
    %v473 = vadd.f32 %v472, %v468
    %v474 = vmax.f32 %v473, 0.0
    %v475 = vadd.f32 %v463, %v474
    %477 = vset.pattern.permute.xlu0 0
    %478 = vperm.xlu0 %477, %v419
    %v479 = vpop.permute.xlu0 %478
    %v481 = vmul.f32 %v479, %v430
    %v482 = vlaneseq
    %v483 = vshrl.u32 %v482, 7
    %v484 = vsub.s32 0, %v483
    %v485 = vrot.slane %v415, %v484
    %v486 = vadd.f32 %v485, %v481
    %v487 = vmax.f32 %v486, 0.0
    %v488 = vadd.f32 %v487, 0.0
    %489 = vset.pattern.permute.xlu0 1
    %490 = vperm.xlu0 %489, %v419
    %v491 = vpop.permute.xlu0 %490
    %v493 = vmul.f32 %v491, %v430
    %v494 = vlaneseq
    %v495 = vshrl.u32 %v494, 7
    %v496 = vsub.s32 1, %v495
    %v497 = vrot.slane %v415, %v496
    %v498 = vadd.f32 %v497, %v493
    %v499 = vmax.f32 %v498, 0.0
    %v500 = vadd.f32 %v488, %v499
    %501 = vset.pattern.permute.xlu0 2
    %502 = vperm.xlu0 %501, %v419
    %v503 = vpop.permute.xlu0 %502
    %v505 = vmul.f32 %v503, %v430
    %v506 = vlaneseq
    %v507 = vshrl.u32 %v506, 7
    %v508 = vsub.s32 2, %v507
    %v509 = vrot.slane %v415, %v508
    %v510 = vadd.f32 %v509, %v505
    %v511 = vmax.f32 %v510, 0.0
    %v512 = vadd.f32 %v500, %v511
    %513 = vset.pattern.permute.xlu0 3
    %514 = vperm.xlu0 %513, %v419
    %v515 = vpop.permute.xlu0 %514
    %v517 = vmul.f32 %v515, %v430
    %v518 = vlaneseq
    %v519 = vshrl.u32 %v518, 7
    %v520 = vsub.s32 3, %v519
    %v521 = vrot.slane %v415, %v520
    %v522 = vadd.f32 %v521, %v517
    %v523 = vmax.f32 %v522, 0.0
    %v524 = vadd.f32 %v512, %v523
    %v525 = vpack.c.bf16 %v524, %v475
    %v526 = vld [vmem:[#allocation15] sm:$0xf]
    %v527 = vld [vmem:[#allocation15 + $0x4] sm:$0xf]
    %v528 = vld [vmem:[#allocation15 + $0x8] sm:$0xf]
    %v529 = vld [vmem:[#allocation15 + $0xc] sm:$0xf]
    %v530 = vld [vmem:[#allocation15 + $0x10] sm:$0xf]
    %v531 = vld [vmem:[#allocation15 + $0x14] sm:$0xf]
    %v532 = vld [vmem:[#allocation15 + $0x18] sm:$0xf]
    %v533 = vld [vmem:[#allocation15 + $0x1c] sm:$0xf]
    %v534 = vld [vmem:[#allocation15 + $0x20] sm:$0xf]
    %v535 = vld [vmem:[#allocation15 + $0x24] sm:$0xf]
    %v536 = vld [vmem:[#allocation15 + $0x28] sm:$0xf]
    %v537 = vld [vmem:[#allocation15 + $0x2c] sm:$0xf]
    %v538 = vld [vmem:[#allocation15 + $0x30] sm:$0xf]
    %v539 = vld [vmem:[#allocation15 + $0x34] sm:$0xf]
    %v540 = vld [vmem:[#allocation15 + $0x38] sm:$0xf]
    %v541 = vld [vmem:[#allocation15 + $0x3c] sm:$0xf]
    %v542 = vld [vmem:[#allocation16] sm:$0x1]
    %v544 = vlaneseq
    %v545 = vshrl.u32 %v544, 7
    %v546 = vsub.s32 0, %v545
    %v547 = vrot.slane %v542, %v546
    %v565 = vunpack.c.l.b16 %v526
    %v566 = vunpack.c.l.b16 %v527
    %v567 = vunpack.c.l.b16 %v528
    %v568 = vunpack.c.l.b16 %v529
    %v569 = vunpack.c.l.b16 %v530
    %v570 = vunpack.c.l.b16 %v531
    %v571 = vunpack.c.l.b16 %v532
    %v572 = vunpack.c.l.b16 %v533
    %v573 = vunpack.c.l.b16 %v534
    %v574 = vunpack.c.l.b16 %v535
    %v575 = vunpack.c.l.b16 %v536
    %v576 = vunpack.c.l.b16 %v537
    %v577 = vunpack.c.l.b16 %v538
    %v578 = vunpack.c.l.b16 %v539
    %v579 = vunpack.c.l.b16 %v540
    %v580 = vunpack.c.l.b16 %v541
    %v581 = vpack.c.b16 %v566, %v565
    %v582 = vpack.c.b16 %v568, %v567
    %v583 = vpack.c.b16 %v570, %v569
    %v584 = vpack.c.b16 %v572, %v571
    %v585 = vpack.c.b16 %v574, %v573
    %v586 = vpack.c.b16 %v576, %v575
    %v587 = vpack.c.b16 %v578, %v577
    %v588 = vpack.c.b16 %v580, %v579
    %597 = vmatprep.subr.bf16.mxu0 0
    %598 = vmatpush1.bf16.msra.mxu0 %v581
    %599 = vmatprep.subr.bf16.mxu0 0
    %600 = vmatpush1.bf16.msra.mxu0 %v582
    %601 = vmatprep.subr.bf16.mxu0 0
    %602 = vmatpush1.bf16.msra.mxu0 %v583
    %603 = vmatprep.subr.bf16.mxu0 0
    %604 = vmatpush1.bf16.msra.mxu0 %v584
    %605 = vmatprep.subr.bf16.mxu0 0
    %606 = vmatpush1.bf16.msra.mxu0 %v585
    %607 = vmatprep.subr.bf16.mxu0 0
    %608 = vmatpush1.bf16.msra.mxu0 %v586
    %609 = vmatprep.subr.bf16.mxu0 0
    %610 = vmatpush1.bf16.msra.mxu0 %v587
    %611 = vmatprep.subr.bf16.mxu0 0
    %612 = vmatpush1.bf16.msra.mxu0 %v588
    %613 = vmatprep.subr.bf16.mxu0 0
    %614 = vmatpush1.bf16.msra.mxu0 0
    %615 = vmatprep.subr.bf16.mxu0 0
    %616 = vmatpush1.bf16.msra.mxu0 0
    %617 = vmatprep.subr.bf16.mxu0 0
    %618 = vmatpush1.bf16.msra.mxu0 0
    %619 = vmatprep.subr.bf16.mxu0 0
    %620 = vmatpush1.bf16.msra.mxu0 0
    %621 = vmatprep.subr.bf16.mxu0 0
    %622 = vmatpush1.bf16.msra.mxu0 0
    %623 = vmatprep.subr.bf16.mxu0 0
    %624 = vmatpush1.bf16.msra.mxu0 0
    %625 = vmatprep.subr.bf16.mxu0 0
    %626 = vmatpush1.bf16.msra.mxu0 0
    %627 = vmatprep.subr.bf16.mxu0 0
    %628 = vmatpush1.bf16.msra.mxu0 0
    %629 = vmatprep.mubr.bf16.mxu0 0
    %630 = vmatmul.mubr.bf16.gmra.mrb[0].mxu0 %v525
    %v631 = vpop.f32.mrb[0].mxu0
    %v632 = vadd.f32 %v547, %v631
    %v633 = vpop.f32.mrb[0].mxu0
    %v634 = vpop.f32.mrb[0].mxu0
    %v635 = vadd.f32 %v547, %v634
    %v636 = vpop.f32.mrb[0].mxu0
    %637 = vdwg.mxu0
    %v638 = vmax.f32 %v632, 0.0
    %v639 = vmax.f32 %v635, 0.0
    %v640 = vpack.c.bf16 %v639, %v638
    %v641 = vld [vmem:[#allocation18] sm:$0xf]
    %v642 = vld [vmem:[#allocation18 + $0x4] sm:$0xf]
    %v643 = vld [vmem:[#allocation18 + $0x8] sm:$0xf]
    %v644 = vld [vmem:[#allocation18 + $0xc] sm:$0xf]
    %v645 = vld [vmem:[#allocation18 + $0x10] sm:$0xf]
    %v646 = vld [vmem:[#allocation18 + $0x14] sm:$0xf]
    %v647 = vld [vmem:[#allocation18 + $0x18] sm:$0xf]
    %v648 = vld [vmem:[#allocation18 + $0x1c] sm:$0xf]
    %v649 = vld [vmem:[#allocation18 + $0x20] sm:$0xf]
    %v650 = vld [vmem:[#allocation18 + $0x24] sm:$0xf]
    %v651 = vld [vmem:[#allocation18 + $0x28] sm:$0xf]
    %v652 = vld [vmem:[#allocation18 + $0x2c] sm:$0xf]
    %v653 = vld [vmem:[#allocation18 + $0x30] sm:$0xf]
    %v654 = vld [vmem:[#allocation18 + $0x34] sm:$0xf]
    %v655 = vld [vmem:[#allocation18 + $0x38] sm:$0xf]
    %v656 = vld [vmem:[#allocation18 + $0x3c] sm:$0xf]
    %v657 = vld [vmem:[#allocation19] sm:$0x1]
    %v659 = vlaneseq
    %v660 = vshrl.u32 %v659, 7
    %v661 = vsub.s32 0, %v660
    %v662 = vrot.slane %v657, %v661
    %v680 = vunpack.c.l.b16 %v641
    %v681 = vunpack.c.l.b16 %v642
    %v682 = vunpack.c.l.b16 %v643
    %v683 = vunpack.c.l.b16 %v644
    %v684 = vunpack.c.l.b16 %v645
    %v685 = vunpack.c.l.b16 %v646
    %v686 = vunpack.c.l.b16 %v647
    %v687 = vunpack.c.l.b16 %v648
    %v688 = vunpack.c.l.b16 %v649
    %v689 = vunpack.c.l.b16 %v650
    %v690 = vunpack.c.l.b16 %v651
    %v691 = vunpack.c.l.b16 %v652
    %v692 = vunpack.c.l.b16 %v653
    %v693 = vunpack.c.l.b16 %v654
    %v694 = vunpack.c.l.b16 %v655
    %v695 = vunpack.c.l.b16 %v656
    %v696 = vpack.c.b16 %v681, %v680
    %v697 = vpack.c.b16 %v683, %v682
    %v698 = vpack.c.b16 %v685, %v684
    %v699 = vpack.c.b16 %v687, %v686
    %v700 = vpack.c.b16 %v689, %v688
    %v701 = vpack.c.b16 %v691, %v690
    %v702 = vpack.c.b16 %v693, %v692
    %v703 = vpack.c.b16 %v695, %v694
    %712 = vmatprep.subr.bf16.mxu0 0
    %713 = vmatpush1.bf16.msra.mxu0 %v696
    %714 = vmatprep.subr.bf16.mxu0 0
    %715 = vmatpush1.bf16.msra.mxu0 %v697
    %716 = vmatprep.subr.bf16.mxu0 0
    %717 = vmatpush1.bf16.msra.mxu0 %v698
    %718 = vmatprep.subr.bf16.mxu0 0
    %719 = vmatpush1.bf16.msra.mxu0 %v699
    %720 = vmatprep.subr.bf16.mxu0 0
    %721 = vmatpush1.bf16.msra.mxu0 %v700
    %722 = vmatprep.subr.bf16.mxu0 0
    %723 = vmatpush1.bf16.msra.mxu0 %v701
    %724 = vmatprep.subr.bf16.mxu0 0
    %725 = vmatpush1.bf16.msra.mxu0 %v702
    %726 = vmatprep.subr.bf16.mxu0 0
    %727 = vmatpush1.bf16.msra.mxu0 %v703
    %728 = vmatprep.subr.bf16.mxu0 0
    %729 = vmatpush1.bf16.msra.mxu0 0
    %730 = vmatprep.subr.bf16.mxu0 0
    %731 = vmatpush1.bf16.msra.mxu0 0
    %732 = vmatprep.subr.bf16.mxu0 0
    %733 = vmatpush1.bf16.msra.mxu0 0
    %734 = vmatprep.subr.bf16.mxu0 0
    %735 = vmatpush1.bf16.msra.mxu0 0
    %736 = vmatprep.subr.bf16.mxu0 0
    %737 = vmatpush1.bf16.msra.mxu0 0
    %738 = vmatprep.subr.bf16.mxu0 0
    %739 = vmatpush1.bf16.msra.mxu0 0
    %740 = vmatprep.subr.bf16.mxu0 0
    %741 = vmatpush1.bf16.msra.mxu0 0
    %742 = vmatprep.subr.bf16.mxu0 0
    %743 = vmatpush1.bf16.msra.mxu0 0
    %744 = vmatprep.mubr.bf16.mxu0 0
    %745 = vmatmul.mubr.bf16.gmra.mrb[0].mxu0 %v640
    %v746 = vpop.f32.mrb[0].mxu0
    %v747 = vadd.f32 %v662, %v746
    %v748 = vpop.f32.mrb[0].mxu0
    %v749 = vpop.f32.mrb[0].mxu0
    %v750 = vadd.f32 %v662, %v749
    %v751 = vpop.f32.mrb[0].mxu0
    %752 = vdwg.mxu0
    %v753 = vld [vmem:[#allocation2] sm:$0xf]
    %v754 = vld [vmem:[#allocation2 + $0x4] sm:$0xf]
    %v755 = vld [vmem:[#allocation2 + $0x8] sm:$0xf]
    %v756 = vld [vmem:[#allocation2 + $0xc] sm:$0xf]
    %v757 = vld [vmem:[#allocation2 + $0x10] sm:$0xf]
    %v758 = vld [vmem:[#allocation2 + $0x14] sm:$0xf]
    %v759 = vld [vmem:[#allocation2 + $0x18] sm:$0xf]
    %v760 = vld [vmem:[#allocation2 + $0x1c] sm:$0xf]
    %v761 = vld [vmem:[#allocation2 + $0x20] sm:$0xf]
    %v762 = vld [vmem:[#allocation2 + $0x24] sm:$0xf]
    %v763 = vld [vmem:[#allocation2 + $0x28] sm:$0xf]
    %v764 = vld [vmem:[#allocation2 + $0x2c] sm:$0xf]
    %v765 = vld [vmem:[#allocation2 + $0x30] sm:$0xf]
    %v766 = vld [vmem:[#allocation2 + $0x34] sm:$0xf]
    %v767 = vld [vmem:[#allocation2 + $0x38] sm:$0xf]
    %v768 = vld [vmem:[#allocation2 + $0x3c] sm:$0xf]
    %v769 = vld [vmem:[#allocation21] sm:$0xf]
    %v770 = vld [vmem:[#allocation21 + $0x4] sm:$0xf]
    %v771 = vld [vmem:[#allocation21 + $0x8] sm:$0xf]
    %v772 = vld [vmem:[#allocation21 + $0xc] sm:$0xf]
    %v773 = vld [vmem:[#allocation21 + $0x10] sm:$0xf]
    %v774 = vld [vmem:[#allocation21 + $0x14] sm:$0xf]
    %v775 = vld [vmem:[#allocation21 + $0x18] sm:$0xf]
    %v776 = vld [vmem:[#allocation21 + $0x1c] sm:$0xf]
    %v777 = vld [vmem:[#allocation21 + $0x20] sm:$0xf]
    %v778 = vld [vmem:[#allocation21 + $0x24] sm:$0xf]
    %v779 = vld [vmem:[#allocation21 + $0x28] sm:$0xf]
    %v780 = vld [vmem:[#allocation21 + $0x2c] sm:$0xf]
    %v781 = vld [vmem:[#allocation21 + $0x30] sm:$0xf]
    %v782 = vld [vmem:[#allocation21 + $0x34] sm:$0xf]
    %v783 = vld [vmem:[#allocation21 + $0x38] sm:$0xf]
    %v784 = vld [vmem:[#allocation21 + $0x3c] sm:$0xf]
    %v785 = vld [vmem:[#allocation22] sm:$0x1]
    %v787 = vlaneseq
    %v788 = vshrl.u32 %v787, 7
    %v789 = vsub.s32 0, %v788
    %v790 = vrot.slane %v785, %v789
    %v808 = vunpack.c.l.b16 %v753
    %v809 = vunpack.c.l.b16 %v754
    %v810 = vunpack.c.l.b16 %v755
    %v811 = vunpack.c.l.b16 %v756
    %v812 = vunpack.c.l.b16 %v757
    %v813 = vunpack.c.l.b16 %v758
    %v814 = vunpack.c.l.b16 %v759
    %v815 = vunpack.c.l.b16 %v760
    %v816 = vunpack.c.l.b16 %v761
    %v817 = vunpack.c.l.b16 %v762
    %v818 = vunpack.c.l.b16 %v763
    %v819 = vunpack.c.l.b16 %v764
    %v820 = vunpack.c.l.b16 %v765
    %v821 = vunpack.c.l.b16 %v766
    %v822 = vunpack.c.l.b16 %v767
    %v823 = vunpack.c.l.b16 %v768
    %v824 = vpack.c.b16 %v809, %v808
    %v825 = vpack.c.b16 %v811, %v810
    %v826 = vpack.c.b16 %v813, %v812
    %v827 = vpack.c.b16 %v815, %v814
    %v828 = vpack.c.b16 %v817, %v816
    %v829 = vpack.c.b16 %v819, %v818
    %v830 = vpack.c.b16 %v821, %v820
    %v831 = vpack.c.b16 %v823, %v822
    %v856 = vunpack.c.l.b16 %v769
    %v857 = vunpack.c.l.b16 %v770
    %v858 = vunpack.c.l.b16 %v771
    %v859 = vunpack.c.l.b16 %v772
    %v860 = vunpack.c.l.b16 %v773
    %v861 = vunpack.c.l.b16 %v774
    %v862 = vunpack.c.l.b16 %v775
    %v863 = vunpack.c.l.b16 %v776
    %v864 = vunpack.c.l.b16 %v777
    %v865 = vunpack.c.l.b16 %v778
    %v866 = vunpack.c.l.b16 %v779
    %v867 = vunpack.c.l.b16 %v780
    %v868 = vunpack.c.l.b16 %v781
    %v869 = vunpack.c.l.b16 %v782
    %v870 = vunpack.c.l.b16 %v783
    %v871 = vunpack.c.l.b16 %v784
    %v872 = vpack.c.b16 %v857, %v856
    %v873 = vpack.c.b16 %v859, %v858
    %v874 = vpack.c.b16 %v861, %v860
    %v875 = vpack.c.b16 %v863, %v862
    %v876 = vpack.c.b16 %v865, %v864
    %v877 = vpack.c.b16 %v867, %v866
    %v878 = vpack.c.b16 %v869, %v868
    %v879 = vpack.c.b16 %v871, %v870
    %888 = vmatprep.subr.bf16.mxu0 0
    %889 = vmatpush1.bf16.msra.mxu0 %v872
    %890 = vmatprep.subr.bf16.mxu0 0
    %891 = vmatpush1.bf16.msra.mxu0 %v873
    %892 = vmatprep.subr.bf16.mxu0 0
    %893 = vmatpush1.bf16.msra.mxu0 %v874
    %894 = vmatprep.subr.bf16.mxu0 0
    %895 = vmatpush1.bf16.msra.mxu0 %v875
    %896 = vmatprep.subr.bf16.mxu0 0
    %897 = vmatpush1.bf16.msra.mxu0 %v876
    %898 = vmatprep.subr.bf16.mxu0 0
    %899 = vmatpush1.bf16.msra.mxu0 %v877
    %900 = vmatprep.subr.bf16.mxu0 0
    %901 = vmatpush1.bf16.msra.mxu0 %v878
    %902 = vmatprep.subr.bf16.mxu0 0
    %903 = vmatpush1.bf16.msra.mxu0 %v879
    %904 = vmatprep.subr.bf16.mxu0 0
    %905 = vmatpush1.bf16.msra.mxu0 0
    %906 = vmatprep.subr.bf16.mxu0 0
    %907 = vmatpush1.bf16.msra.mxu0 0
    %908 = vmatprep.subr.bf16.mxu0 0
    %909 = vmatpush1.bf16.msra.mxu0 0
    %910 = vmatprep.subr.bf16.mxu0 0
    %911 = vmatpush1.bf16.msra.mxu0 0
    %912 = vmatprep.subr.bf16.mxu0 0
    %913 = vmatpush1.bf16.msra.mxu0 0
    %914 = vmatprep.subr.bf16.mxu0 0
    %915 = vmatpush1.bf16.msra.mxu0 0
    %916 = vmatprep.subr.bf16.mxu0 0
    %917 = vmatpush1.bf16.msra.mxu0 0
    %918 = vmatprep.subr.bf16.mxu0 0
    %919 = vmatpush1.bf16.msra.mxu0 0
    %920 = vmatprep.mubr.bf16.mxu0 0
    %921 = vmatmul.mubr.bf16.gmra.mrb[0].mxu0 %v824
    %v922 = vpop.f32.mrb[0].mxu0
    %v923 = vadd.f32 %v790, %v922
    %v924 = vpop.f32.mrb[0].mxu0
    %v925 = vpop.f32.mrb[0].mxu0
    %v926 = vadd.f32 %v790, %v925
    %v927 = vpop.f32.mrb[0].mxu0
    %928 = vmatprep.mubr.bf16.mxu0 0
    %929 = vmatmul.mubr.bf16.gmra.mrb[0].mxu0 %v825
    %v930 = vpop.f32.mrb[0].mxu0
    %v931 = vadd.f32 %v790, %v930
    %v932 = vpop.f32.mrb[0].mxu0
    %v933 = vpop.f32.mrb[0].mxu0
    %v934 = vadd.f32 %v790, %v933
    %v935 = vpop.f32.mrb[0].mxu0
    %936 = vmatprep.mubr.bf16.mxu0 0
    %937 = vmatmul.mubr.bf16.gmra.mrb[0].mxu0 %v826
    %v938 = vpop.f32.mrb[0].mxu0
    %v939 = vadd.f32 %v790, %v938
    %v940 = vpop.f32.mrb[0].mxu0
    %v941 = vpop.f32.mrb[0].mxu0
    %v942 = vadd.f32 %v790, %v941
    %v943 = vpop.f32.mrb[0].mxu0
    %944 = vmatprep.mubr.bf16.mxu0 0
    %945 = vmatmul.mubr.bf16.gmra.mrb[0].mxu0 %v827
    %v946 = vpop.f32.mrb[0].mxu0
    %v947 = vadd.f32 %v790, %v946
    %v948 = vpop.f32.mrb[0].mxu0
    %v949 = vpop.f32.mrb[0].mxu0
    %v950 = vadd.f32 %v790, %v949
    %v951 = vpop.f32.mrb[0].mxu0
    %952 = vmatprep.mubr.bf16.mxu0 0
    %953 = vmatmul.mubr.bf16.gmra.mrb[0].mxu0 %v828
    %v954 = vpop.f32.mrb[0].mxu0
    %v955 = vadd.f32 %v790, %v954
    %v956 = vpop.f32.mrb[0].mxu0
    %v957 = vpop.f32.mrb[0].mxu0
    %v958 = vadd.f32 %v790, %v957
    %v959 = vpop.f32.mrb[0].mxu0
    %960 = vmatprep.mubr.bf16.mxu0 0
    %961 = vmatmul.mubr.bf16.gmra.mrb[0].mxu0 %v829
    %v962 = vpop.f32.mrb[0].mxu0
    %v963 = vadd.f32 %v790, %v962
    %v964 = vpop.f32.mrb[0].mxu0
    %v965 = vpop.f32.mrb[0].mxu0
    %v966 = vadd.f32 %v790, %v965
    %v967 = vpop.f32.mrb[0].mxu0
    %968 = vmatprep.mubr.bf16.mxu0 0
    %969 = vmatmul.mubr.bf16.gmra.mrb[0].mxu0 %v830
    %v970 = vpop.f32.mrb[0].mxu0
    %v971 = vadd.f32 %v790, %v970
    %v972 = vpop.f32.mrb[0].mxu0
    %v973 = vpop.f32.mrb[0].mxu0
    %v974 = vadd.f32 %v790, %v973
    %v975 = vpop.f32.mrb[0].mxu0
    %976 = vmatprep.mubr.bf16.mxu0 0
    %977 = vmatmul.mubr.bf16.gmra.mrb[0].mxu0 %v831
    %v978 = vpop.f32.mrb[0].mxu0
    %v979 = vadd.f32 %v790, %v978
    %v980 = vpop.f32.mrb[0].mxu0
    %v981 = vpop.f32.mrb[0].mxu0
    %v982 = vadd.f32 %v790, %v981
    %v983 = vpop.f32.mrb[0].mxu0
    %984 = vdwg.mxu0
    %v985 = vpack.c.bf16 %v926, %v923
    %v986 = vpack.c.bf16 %v934, %v931
    %v987 = vpack.c.bf16 %v942, %v939
    %v988 = vpack.c.bf16 %v950, %v947
    %v989 = vpack.c.bf16 %v958, %v955
    %v990 = vpack.c.bf16 %v966, %v963
    %v991 = vpack.c.bf16 %v974, %v971
    %v992 = vpack.c.bf16 %v982, %v979
    %v993 = vld [vmem:[#allocation4] sm:$0xf]
    %v994 = vld [vmem:[#allocation4 + $0x4] sm:$0xf]
    %v997 = vunpack.c.l.b16 %v993
    %v998 = vunpack.c.l.b16 %v994
    %v999 = vpack.c.b16 %v998, %v997
    %1001 = vmatprep.subr.bf16.mxu0 0
    %1002 = vmatpush1.bf16.msra.mxu0 %v985
    %1003 = vmatprep.subr.bf16.mxu0 0
    %1004 = vmatpush1.bf16.msra.mxu0 %v986
    %1005 = vmatprep.subr.bf16.mxu0 0
    %1006 = vmatpush1.bf16.msra.mxu0 %v987
    %1007 = vmatprep.subr.bf16.mxu0 0
    %1008 = vmatpush1.bf16.msra.mxu0 %v988
    %1009 = vmatprep.subr.bf16.mxu0 0
    %1010 = vmatpush1.bf16.msra.mxu0 %v989
    %1011 = vmatprep.subr.bf16.mxu0 0
    %1012 = vmatpush1.bf16.msra.mxu0 %v990
    %1013 = vmatprep.subr.bf16.mxu0 0
    %1014 = vmatpush1.bf16.msra.mxu0 %v991
    %1015 = vmatprep.subr.bf16.mxu0 0
    %1016 = vmatpush1.bf16.msra.mxu0 %v992
    %1017 = vmatprep.subr.bf16.mxu0 0
    %1018 = vmatpush1.bf16.msra.mxu0 0
    %1019 = vmatprep.subr.bf16.mxu0 0
    %1020 = vmatpush1.bf16.msra.mxu0 0
    %1021 = vmatprep.subr.bf16.mxu0 0
    %1022 = vmatpush1.bf16.msra.mxu0 0
    %1023 = vmatprep.subr.bf16.mxu0 0
    %1024 = vmatpush1.bf16.msra.mxu0 0
    %1025 = vmatprep.subr.bf16.mxu0 0
    %1026 = vmatpush1.bf16.msra.mxu0 0
    %1027 = vmatprep.subr.bf16.mxu0 0
    %1028 = vmatpush1.bf16.msra.mxu0 0
    %1029 = vmatprep.subr.bf16.mxu0 0
    %1030 = vmatpush1.bf16.msra.mxu0 0
    %1031 = vmatprep.subr.bf16.mxu0 0
    %1032 = vmatpush1.bf16.msra.mxu0 0
    %1033 = vmatprep.mubr.bf16.mxu0 0
    %1034 = vmatmul.mubr.bf16.gmra.mrb[0].mxu0 %v999
    %v1035 = vpop.f32.mrb[0].mxu0
    %v1036 = vadd.f32 %v747, %v1035
    %v1037 = vpop.f32.mrb[0].mxu0
    %v1038 = vpop.f32.mrb[0].mxu0
    %v1039 = vadd.f32 %v750, %v1038
    %v1040 = vpop.f32.mrb[0].mxu0
    %1041 = vdwg.mxu0
    %v1042 = vmax.f32 %v1036, 0.0
    %v1043 = vmax.f32 %v1039, 0.0
    %v1044 = vpack.c.bf16 %v1043, %v1042
    %v1045 = vld [vmem:[%s4] sm:$0xf]
    %v1046 = vld [vmem:[%s4 + $0x4] sm:$0xf]
    %v1047 = vld [vmem:[%s4 + $0x8] sm:$0xf]
    %v1048 = vld [vmem:[%s4 + $0xc] sm:$0xf]
    %v1049 = vld [vmem:[%s4 + $0x10] sm:$0xf]
    %v1050 = vld [vmem:[%s4 + $0x14] sm:$0xf]
    %v1051 = vld [vmem:[%s4 + $0x18] sm:$0xf]
    %v1052 = vld [vmem:[%s4 + $0x1c] sm:$0xf]
    %v1053 = vld [vmem:[%s4 + $0x20] sm:$0xf]
    %v1054 = vld [vmem:[%s4 + $0x24] sm:$0xf]
    %v1055 = vld [vmem:[%s4 + $0x28] sm:$0xf]
    %v1056 = vld [vmem:[%s4 + $0x2c] sm:$0xf]
    %v1057 = vld [vmem:[%s4 + $0x30] sm:$0xf]
    %v1058 = vld [vmem:[%s4 + $0x34] sm:$0xf]
    %v1059 = vld [vmem:[%s4 + $0x38] sm:$0xf]
    %v1060 = vld [vmem:[%s4 + $0x3c] sm:$0xf]
    %v1077 = vunpack.c.l.b16 %v1045
    %v1078 = vunpack.c.l.b16 %v1046
    %v1079 = vunpack.c.l.b16 %v1047
    %v1080 = vunpack.c.l.b16 %v1048
    %v1081 = vunpack.c.l.b16 %v1049
    %v1082 = vunpack.c.l.b16 %v1050
    %v1083 = vunpack.c.l.b16 %v1051
    %v1084 = vunpack.c.l.b16 %v1052
    %v1085 = vunpack.c.l.b16 %v1053
    %v1086 = vunpack.c.l.b16 %v1054
    %v1087 = vunpack.c.l.b16 %v1055
    %v1088 = vunpack.c.l.b16 %v1056
    %v1089 = vunpack.c.l.b16 %v1057
    %v1090 = vunpack.c.l.b16 %v1058
    %v1091 = vunpack.c.l.b16 %v1059
    %v1092 = vunpack.c.l.b16 %v1060
    %v1093 = vpack.c.b16 %v1078, %v1077
    %v1094 = vpack.c.b16 %v1080, %v1079
    %v1095 = vpack.c.b16 %v1082, %v1081
    %v1096 = vpack.c.b16 %v1084, %v1083
    %v1097 = vpack.c.b16 %v1086, %v1085
    %v1098 = vpack.c.b16 %v1088, %v1087
    %v1099 = vpack.c.b16 %v1090, %v1089
    %v1100 = vpack.c.b16 %v1092, %v1091
    %vm1101 = vcmask 130048
    %v1103 = vsel %vm1101, %v1093, 0
    %v1106 = vsel %vm1101, %v1094, 0
    %v1109 = vsel %vm1101, %v1095, 0
    %v1112 = vsel %vm1101, %v1096, 0
    %v1115 = vsel %vm1101, %v1097, 0
    %v1118 = vsel %vm1101, %v1098, 0
    %v1121 = vsel %vm1101, %v1099, 0
    %v1124 = vsel %vm1101, %v1100, 0
    %1126 = vmatprep.subr.bf16.mxu0 0
    %1127 = vmatpush1.bf16.msra.mxu0 %v1044
    %1128 = vmatprep.subr.bf16.mxu0 0
    %1129 = vmatpush1.bf16.msra.mxu0 0
    %1130 = vmatprep.subr.bf16.mxu0 0
    %1131 = vmatpush1.bf16.msra.mxu0 0
    %1132 = vmatprep.subr.bf16.mxu0 0
    %1133 = vmatpush1.bf16.msra.mxu0 0
    %1134 = vmatprep.subr.bf16.mxu0 0
    %1135 = vmatpush1.bf16.msra.mxu0 0
    %1136 = vmatprep.subr.bf16.mxu0 0
    %1137 = vmatpush1.bf16.msra.mxu0 0
    %1138 = vmatprep.subr.bf16.mxu0 0
    %1139 = vmatpush1.bf16.msra.mxu0 0
    %1140 = vmatprep.subr.bf16.mxu0 0
    %1141 = vmatpush1.bf16.msra.mxu0 0
    %1142 = vmatprep.subr.bf16.mxu0 0
    %1143 = vmatpush1.bf16.msra.mxu0 0
    %1144 = vmatprep.subr.bf16.mxu0 0
    %1145 = vmatpush1.bf16.msra.mxu0 0
    %1146 = vmatprep.subr.bf16.mxu0 0
    %1147 = vmatpush1.bf16.msra.mxu0 0
    %1148 = vmatprep.subr.bf16.mxu0 0
    %1149 = vmatpush1.bf16.msra.mxu0 0
    %1150 = vmatprep.subr.bf16.mxu0 0
    %1151 = vmatpush1.bf16.msra.mxu0 0
    %1152 = vmatprep.subr.bf16.mxu0 0
    %1153 = vmatpush1.bf16.msra.mxu0 0
    %1154 = vmatprep.subr.bf16.mxu0 0
    %1155 = vmatpush1.bf16.msra.mxu0 0
    %1156 = vmatprep.subr.bf16.mxu0 0
    %1157 = vmatpush1.bf16.msra.mxu0 0
    %1158 = vmatprep.mubr.bf16.mxu0 0
    %1159 = vmatmul.mubr.bf16.gmra.mrb[0].mxu0 %v1103
    %v1160 = vpop.f32.mrb[0].mxu0
    %v1161 = vadd.f32 0.0, %v1160
    %v1162 = vpop.f32.mrb[0].mxu0
    %v1163 = vpop.f32.mrb[0].mxu0
    %v1164 = vadd.f32 0.0, %v1163
    %v1165 = vpop.f32.mrb[0].mxu0
    %1166 = vmatprep.mubr.bf16.mxu0 0
    %1167 = vmatmul.mubr.bf16.gmra.mrb[0].mxu0 %v1106
    %v1168 = vpop.f32.mrb[0].mxu0
    %v1169 = vadd.f32 0.0, %v1168
    %v1170 = vpop.f32.mrb[0].mxu0
    %v1171 = vpop.f32.mrb[0].mxu0
    %v1172 = vadd.f32 0.0, %v1171
    %v1173 = vpop.f32.mrb[0].mxu0
    %1174 = vmatprep.mubr.bf16.mxu0 0
    %1175 = vmatmul.mubr.bf16.gmra.mrb[0].mxu0 %v1109
    %v1176 = vpop.f32.mrb[0].mxu0
    %v1177 = vadd.f32 0.0, %v1176
    %v1178 = vpop.f32.mrb[0].mxu0
    %v1179 = vpop.f32.mrb[0].mxu0
    %v1180 = vadd.f32 0.0, %v1179
    %v1181 = vpop.f32.mrb[0].mxu0
    %1182 = vmatprep.mubr.bf16.mxu0 0
    %1183 = vmatmul.mubr.bf16.gmra.mrb[0].mxu0 %v1112
    %v1184 = vpop.f32.mrb[0].mxu0
    %v1185 = vadd.f32 0.0, %v1184
    %v1186 = vpop.f32.mrb[0].mxu0
    %v1187 = vpop.f32.mrb[0].mxu0
    %v1188 = vadd.f32 0.0, %v1187
    %v1189 = vpop.f32.mrb[0].mxu0
    %1190 = vmatprep.mubr.bf16.mxu0 0
    %1191 = vmatmul.mubr.bf16.gmra.mrb[0].mxu0 %v1115
    %v1192 = vpop.f32.mrb[0].mxu0
    %v1193 = vadd.f32 0.0, %v1192
    %v1194 = vpop.f32.mrb[0].mxu0
    %v1195 = vpop.f32.mrb[0].mxu0
    %v1196 = vadd.f32 0.0, %v1195
    %v1197 = vpop.f32.mrb[0].mxu0
    %1198 = vmatprep.mubr.bf16.mxu0 0
    %1199 = vmatmul.mubr.bf16.gmra.mrb[0].mxu0 %v1118
    %v1200 = vpop.f32.mrb[0].mxu0
    %v1201 = vadd.f32 0.0, %v1200
    %v1202 = vpop.f32.mrb[0].mxu0
    %v1203 = vpop.f32.mrb[0].mxu0
    %v1204 = vadd.f32 0.0, %v1203
    %v1205 = vpop.f32.mrb[0].mxu0
    %1206 = vmatprep.mubr.bf16.mxu0 0
    %1207 = vmatmul.mubr.bf16.gmra.mrb[0].mxu0 %v1121
    %v1208 = vpop.f32.mrb[0].mxu0
    %v1209 = vadd.f32 0.0, %v1208
    %v1210 = vpop.f32.mrb[0].mxu0
    %v1211 = vpop.f32.mrb[0].mxu0
    %v1212 = vadd.f32 0.0, %v1211
    %v1213 = vpop.f32.mrb[0].mxu0
    %1214 = vmatprep.mubr.bf16.mxu0 0
    %1215 = vmatmul.mubr.bf16.gmra.mrb[0].mxu0 %v1124
    %v1216 = vpop.f32.mrb[0].mxu0
    %v1217 = vadd.f32 0.0, %v1216
    %v1218 = vpop.f32.mrb[0].mxu0
    %v1219 = vpop.f32.mrb[0].mxu0
    %v1220 = vadd.f32 0.0, %v1219
    %v1221 = vpop.f32.mrb[0].mxu0
    %1222 = vdwg.mxu0
    %v1223 = vadd.f32 %v923, %v1161
    %v1224 = vadd.f32 %v926, %v1164
    %v1225 = vadd.f32 %v931, %v1169
    %v1226 = vadd.f32 %v934, %v1172
    %v1227 = vadd.f32 %v939, %v1177
    %v1228 = vadd.f32 %v942, %v1180
    %v1229 = vadd.f32 %v947, %v1185
    %v1230 = vadd.f32 %v950, %v1188
    %v1231 = vadd.f32 %v955, %v1193
    %v1232 = vadd.f32 %v958, %v1196
    %v1233 = vadd.f32 %v963, %v1201
    %v1234 = vadd.f32 %v966, %v1204
    %v1235 = vadd.f32 %v971, %v1209
    %v1236 = vadd.f32 %v974, %v1212
    %v1237 = vadd.f32 %v979, %v1217
    %v1238 = vadd.f32 %v982, %v1220
    %v1239 = vpack.c.bf16 %v1224, %v1223
    %v1240 = vpack.c.bf16 %v1226, %v1225
    %v1241 = vpack.c.bf16 %v1228, %v1227
    %v1242 = vpack.c.bf16 %v1230, %v1229
    %v1243 = vpack.c.bf16 %v1232, %v1231
    %v1244 = vpack.c.bf16 %v1234, %v1233
    %v1245 = vpack.c.bf16 %v1236, %v1235
    %v1246 = vpack.c.bf16 %v1238, %v1237
    %v1247 = vld [vmem:[%s17] sm:$0xf]
    %v1248 = vld [vmem:[%s17 + $0x4] sm:$0xf]
    %v1249 = vld [vmem:[%s17 + $0x8] sm:$0xf]
    %v1250 = vld [vmem:[%s17 + $0xc] sm:$0xf]
    %v1251 = vld [vmem:[%s17 + $0x10] sm:$0xf]
    %v1252 = vld [vmem:[%s17 + $0x14] sm:$0xf]
    %v1253 = vld [vmem:[%s17 + $0x18] sm:$0xf]
    %v1254 = vld [vmem:[%s17 + $0x1c] sm:$0xf]
    %v1255 = vld [vmem:[%s17 + $0x20] sm:$0xf]
    %v1256 = vld [vmem:[%s17 + $0x24] sm:$0xf]
    %v1257 = vld [vmem:[%s17 + $0x28] sm:$0xf]
    %v1258 = vld [vmem:[%s17 + $0x2c] sm:$0xf]
    %v1259 = vld [vmem:[%s17 + $0x30] sm:$0xf]
    %v1260 = vld [vmem:[%s17 + $0x34] sm:$0xf]
    %v1261 = vld [vmem:[%s17 + $0x38] sm:$0xf]
    %v1262 = vld [vmem:[%s17 + $0x3c] sm:$0xf]
    %v1263 = vld [vmem:[#allocation24] sm:$0x1]
    %v1265 = vlaneseq
    %v1266 = vshrl.u32 %v1265, 7
    %v1267 = vsub.s32 0, %v1266
    %v1268 = vrot.slane %v1263, %v1267
    %v1286 = vunpack.c.l.b16 %v1247
    %v1287 = vunpack.c.l.b16 %v1248
    %v1288 = vunpack.c.l.b16 %v1249
    %v1289 = vunpack.c.l.b16 %v1250
    %v1290 = vunpack.c.l.b16 %v1251
    %v1291 = vunpack.c.l.b16 %v1252
    %v1292 = vunpack.c.l.b16 %v1253
    %v1293 = vunpack.c.l.b16 %v1254
    %v1294 = vunpack.c.l.b16 %v1255
    %v1295 = vunpack.c.l.b16 %v1256
    %v1296 = vunpack.c.l.b16 %v1257
    %v1297 = vunpack.c.l.b16 %v1258
    %v1298 = vunpack.c.l.b16 %v1259
    %v1299 = vunpack.c.l.b16 %v1260
    %v1300 = vunpack.c.l.b16 %v1261
    %v1301 = vunpack.c.l.b16 %v1262
    %v1302 = vpack.c.b16 %v1287, %v1286
    %v1303 = vpack.c.b16 %v1289, %v1288
    %v1304 = vpack.c.b16 %v1291, %v1290
    %v1305 = vpack.c.b16 %v1293, %v1292
    %v1306 = vpack.c.b16 %v1295, %v1294
    %v1307 = vpack.c.b16 %v1297, %v1296
    %v1308 = vpack.c.b16 %v1299, %v1298
    %v1309 = vpack.c.b16 %v1301, %v1300
    %1318 = vmatprep.subr.bf16.mxu0 0
    %1319 = vmatpush1.bf16.msra.mxu0 %v1302
    %1320 = vmatprep.subr.bf16.mxu0 0
    %1321 = vmatpush1.bf16.msra.mxu0 %v1303
    %1322 = vmatprep.subr.bf16.mxu0 0
    %1323 = vmatpush1.bf16.msra.mxu0 %v1304
    %1324 = vmatprep.subr.bf16.mxu0 0
    %1325 = vmatpush1.bf16.msra.mxu0 %v1305
    %1326 = vmatprep.subr.bf16.mxu0 0
    %1327 = vmatpush1.bf16.msra.mxu0 %v1306
    %1328 = vmatprep.subr.bf16.mxu0 0
    %1329 = vmatpush1.bf16.msra.mxu0 %v1307
    %1330 = vmatprep.subr.bf16.mxu0 0
    %1331 = vmatpush1.bf16.msra.mxu0 %v1308
    %1332 = vmatprep.subr.bf16.mxu0 0
    %1333 = vmatpush1.bf16.msra.mxu0 %v1309
    %1334 = vmatprep.subr.bf16.mxu0 0
    %1335 = vmatpush1.bf16.msra.mxu0 0
    %1336 = vmatprep.subr.bf16.mxu0 0
    %1337 = vmatpush1.bf16.msra.mxu0 0
    %1338 = vmatprep.subr.bf16.mxu0 0
    %1339 = vmatpush1.bf16.msra.mxu0 0
    %1340 = vmatprep.subr.bf16.mxu0 0
    %1341 = vmatpush1.bf16.msra.mxu0 0
    %1342 = vmatprep.subr.bf16.mxu0 0
    %1343 = vmatpush1.bf16.msra.mxu0 0
    %1344 = vmatprep.subr.bf16.mxu0 0
    %1345 = vmatpush1.bf16.msra.mxu0 0
    %1346 = vmatprep.subr.bf16.mxu0 0
    %1347 = vmatpush1.bf16.msra.mxu0 0
    %1348 = vmatprep.subr.bf16.mxu0 0
    %1349 = vmatpush1.bf16.msra.mxu0 0
    %1350 = vmatprep.mubr.bf16.mxu0 0
    %1351 = vmatmul.mubr.bf16.gmra.mrb[0].mxu0 %v1239
    %v1352 = vpop.f32.mrb[0].mxu0
    %v1353 = vadd.f32 %v1268, %v1352
    %v1354 = vpop.f32.mrb[0].mxu0
    %v1355 = vpop.f32.mrb[0].mxu0
    %v1356 = vadd.f32 %v1268, %v1355
    %v1357 = vpop.f32.mrb[0].mxu0
    %1358 = vmatprep.mubr.bf16.mxu0 0
    %1359 = vmatmul.mubr.bf16.gmra.mrb[0].mxu0 %v1240
    %v1360 = vpop.f32.mrb[0].mxu0
    %v1361 = vadd.f32 %v1268, %v1360
    %v1362 = vpop.f32.mrb[0].mxu0
    %v1363 = vpop.f32.mrb[0].mxu0
    %v1364 = vadd.f32 %v1268, %v1363
    %v1365 = vpop.f32.mrb[0].mxu0
    %1366 = vmatprep.mubr.bf16.mxu0 0
    %1367 = vmatmul.mubr.bf16.gmra.mrb[0].mxu0 %v1241
    %v1368 = vpop.f32.mrb[0].mxu0
    %v1369 = vadd.f32 %v1268, %v1368
    %v1370 = vpop.f32.mrb[0].mxu0
    %v1371 = vpop.f32.mrb[0].mxu0
    %v1372 = vadd.f32 %v1268, %v1371
    %v1373 = vpop.f32.mrb[0].mxu0
    %1374 = vmatprep.mubr.bf16.mxu0 0
    %1375 = vmatmul.mubr.bf16.gmra.mrb[0].mxu0 %v1242
    %v1376 = vpop.f32.mrb[0].mxu0
    %v1377 = vadd.f32 %v1268, %v1376
    %v1378 = vpop.f32.mrb[0].mxu0
    %v1379 = vpop.f32.mrb[0].mxu0
    %v1380 = vadd.f32 %v1268, %v1379
    %v1381 = vpop.f32.mrb[0].mxu0
    %1382 = vmatprep.mubr.bf16.mxu0 0
    %1383 = vmatmul.mubr.bf16.gmra.mrb[0].mxu0 %v1243
    %v1384 = vpop.f32.mrb[0].mxu0
    %v1385 = vadd.f32 %v1268, %v1384
    %v1386 = vpop.f32.mrb[0].mxu0
    %v1387 = vpop.f32.mrb[0].mxu0
    %v1388 = vadd.f32 %v1268, %v1387
    %v1389 = vpop.f32.mrb[0].mxu0
    %1390 = vmatprep.mubr.bf16.mxu0 0
    %1391 = vmatmul.mubr.bf16.gmra.mrb[0].mxu0 %v1244
    %v1392 = vpop.f32.mrb[0].mxu0
    %v1393 = vadd.f32 %v1268, %v1392
    %v1394 = vpop.f32.mrb[0].mxu0
    %v1395 = vpop.f32.mrb[0].mxu0
    %v1396 = vadd.f32 %v1268, %v1395
    %v1397 = vpop.f32.mrb[0].mxu0
    %1398 = vmatprep.mubr.bf16.mxu0 0
    %1399 = vmatmul.mubr.bf16.gmra.mrb[0].mxu0 %v1245
    %v1400 = vpop.f32.mrb[0].mxu0
    %v1401 = vadd.f32 %v1268, %v1400
    %v1402 = vpop.f32.mrb[0].mxu0
    %v1403 = vpop.f32.mrb[0].mxu0
    %v1404 = vadd.f32 %v1268, %v1403
    %v1405 = vpop.f32.mrb[0].mxu0
    %1406 = vmatprep.mubr.bf16.mxu0 0
    %1407 = vmatmul.mubr.bf16.gmra.mrb[0].mxu0 %v1246
    %v1408 = vpop.f32.mrb[0].mxu0
    %v1409 = vadd.f32 %v1268, %v1408
    %v1410 = vpop.f32.mrb[0].mxu0
    %v1411 = vpop.f32.mrb[0].mxu0
    %v1412 = vadd.f32 %v1268, %v1411
    %v1413 = vpop.f32.mrb[0].mxu0
    %1414 = vdwg.mxu0
    %v1415 = vmax.f32 %v1353, 0.0
    %v1416 = vmax.f32 %v1356, 0.0
    %v1417 = vmax.f32 %v1361, 0.0
    %v1418 = vmax.f32 %v1364, 0.0
    %v1419 = vmax.f32 %v1369, 0.0
    %v1420 = vmax.f32 %v1372, 0.0
    %v1421 = vmax.f32 %v1377, 0.0
    %v1422 = vmax.f32 %v1380, 0.0
    %v1423 = vmax.f32 %v1385, 0.0
    %v1424 = vmax.f32 %v1388, 0.0
    %v1425 = vmax.f32 %v1393, 0.0
    %v1426 = vmax.f32 %v1396, 0.0
    %v1427 = vmax.f32 %v1401, 0.0
    %v1428 = vmax.f32 %v1404, 0.0
    %v1429 = vmax.f32 %v1409, 0.0
    %v1430 = vmax.f32 %v1412, 0.0
    %v1431 = vpack.c.bf16 %v1416, %v1415
    %v1432 = vpack.c.bf16 %v1418, %v1417
    %v1433 = vpack.c.bf16 %v1420, %v1419
    %v1434 = vpack.c.bf16 %v1422, %v1421
    %v1435 = vpack.c.bf16 %v1424, %v1423
    %v1436 = vpack.c.bf16 %v1426, %v1425
    %v1437 = vpack.c.bf16 %v1428, %v1427
    %v1438 = vpack.c.bf16 %v1430, %v1429
    %v1439 = vld [vmem:[#allocation25] sm:$0xf]
    %v1440 = vld [vmem:[#allocation25 + $0x4] sm:$0xf]
    %v1441 = vld [vmem:[#allocation25 + $0x8] sm:$0xf]
    %v1442 = vld [vmem:[#allocation25 + $0xc] sm:$0xf]
    %v1443 = vld [vmem:[#allocation25 + $0x10] sm:$0xf]
    %v1444 = vld [vmem:[#allocation25 + $0x14] sm:$0xf]
    %v1445 = vld [vmem:[#allocation25 + $0x18] sm:$0xf]
    %v1446 = vld [vmem:[#allocation25 + $0x1c] sm:$0xf]
    %v1447 = vld [vmem:[#allocation25 + $0x20] sm:$0xf]
    %v1448 = vld [vmem:[#allocation25 + $0x24] sm:$0xf]
    %v1449 = vld [vmem:[#allocation25 + $0x28] sm:$0xf]
    %v1450 = vld [vmem:[#allocation25 + $0x2c] sm:$0xf]
    %v1451 = vld [vmem:[#allocation25 + $0x30] sm:$0xf]
    %v1452 = vld [vmem:[#allocation25 + $0x34] sm:$0xf]
    %v1453 = vld [vmem:[#allocation25 + $0x38] sm:$0xf]
    %v1454 = vld [vmem:[#allocation25 + $0x3c] sm:$0xf]
    %v1455 = vld [vmem:[#allocation27] sm:$0x1]
    %v1457 = vlaneseq
    %v1458 = vshrl.u32 %v1457, 7
    %v1459 = vsub.s32 0, %v1458
    %v1460 = vrot.slane %v1455, %v1459
    %v1478 = vunpack.c.l.b16 %v1439
    %v1479 = vunpack.c.l.b16 %v1440
    %v1480 = vunpack.c.l.b16 %v1441
    %v1481 = vunpack.c.l.b16 %v1442
    %v1482 = vunpack.c.l.b16 %v1443
    %v1483 = vunpack.c.l.b16 %v1444
    %v1484 = vunpack.c.l.b16 %v1445
    %v1485 = vunpack.c.l.b16 %v1446
    %v1486 = vunpack.c.l.b16 %v1447
    %v1487 = vunpack.c.l.b16 %v1448
    %v1488 = vunpack.c.l.b16 %v1449
    %v1489 = vunpack.c.l.b16 %v1450
    %v1490 = vunpack.c.l.b16 %v1451
    %v1491 = vunpack.c.l.b16 %v1452
    %v1492 = vunpack.c.l.b16 %v1453
    %v1493 = vunpack.c.l.b16 %v1454
    %v1494 = vpack.c.b16 %v1479, %v1478
    %v1495 = vpack.c.b16 %v1481, %v1480
    %v1496 = vpack.c.b16 %v1483, %v1482
    %v1497 = vpack.c.b16 %v1485, %v1484
    %v1498 = vpack.c.b16 %v1487, %v1486
    %v1499 = vpack.c.b16 %v1489, %v1488
    %v1500 = vpack.c.b16 %v1491, %v1490
    %v1501 = vpack.c.b16 %v1493, %v1492
    %1510 = vmatprep.subr.bf16.mxu0 0
    %1511 = vmatpush1.bf16.msra.mxu0 %v1494
    %1512 = vmatprep.subr.bf16.mxu0 0
    %1513 = vmatpush1.bf16.msra.mxu0 %v1495
    %1514 = vmatprep.subr.bf16.mxu0 0
    %1515 = vmatpush1.bf16.msra.mxu0 %v1496
    %1516 = vmatprep.subr.bf16.mxu0 0
    %1517 = vmatpush1.bf16.msra.mxu0 %v1497
    %1518 = vmatprep.subr.bf16.mxu0 0
    %1519 = vmatpush1.bf16.msra.mxu0 %v1498
    %1520 = vmatprep.subr.bf16.mxu0 0
    %1521 = vmatpush1.bf16.msra.mxu0 %v1499
    %1522 = vmatprep.subr.bf16.mxu0 0
    %1523 = vmatpush1.bf16.msra.mxu0 %v1500
    %1524 = vmatprep.subr.bf16.mxu0 0
    %1525 = vmatpush1.bf16.msra.mxu0 %v1501
    %1526 = vmatprep.subr.bf16.mxu0 0
    %1527 = vmatpush1.bf16.msra.mxu0 0
    %1528 = vmatprep.subr.bf16.mxu0 0
    %1529 = vmatpush1.bf16.msra.mxu0 0
    %1530 = vmatprep.subr.bf16.mxu0 0
    %1531 = vmatpush1.bf16.msra.mxu0 0
    %1532 = vmatprep.subr.bf16.mxu0 0
    %1533 = vmatpush1.bf16.msra.mxu0 0
    %1534 = vmatprep.subr.bf16.mxu0 0
    %1535 = vmatpush1.bf16.msra.mxu0 0
    %1536 = vmatprep.subr.bf16.mxu0 0
    %1537 = vmatpush1.bf16.msra.mxu0 0
    %1538 = vmatprep.subr.bf16.mxu0 0
    %1539 = vmatpush1.bf16.msra.mxu0 0
    %1540 = vmatprep.subr.bf16.mxu0 0
    %1541 = vmatpush1.bf16.msra.mxu0 0
    %1542 = vmatprep.mubr.bf16.mxu0 0
    %1543 = vmatmul.mubr.bf16.gmra.mrb[0].mxu0 %v1431
    %v1544 = vpop.f32.mrb[0].mxu0
    %v1545 = vadd.f32 %v1460, %v1544
    %v1546 = vpop.f32.mrb[0].mxu0
    %v1547 = vpop.f32.mrb[0].mxu0
    %v1548 = vadd.f32 %v1460, %v1547
    %v1549 = vpop.f32.mrb[0].mxu0
    %1550 = vmatprep.mubr.bf16.mxu0 0
    %1551 = vmatmul.mubr.bf16.gmra.mrb[0].mxu0 %v1432
    %v1552 = vpop.f32.mrb[0].mxu0
    %v1553 = vadd.f32 %v1460, %v1552
    %v1554 = vpop.f32.mrb[0].mxu0
    %v1555 = vpop.f32.mrb[0].mxu0
    %v1556 = vadd.f32 %v1460, %v1555
    %v1557 = vpop.f32.mrb[0].mxu0
    %1558 = vmatprep.mubr.bf16.mxu0 0
    %1559 = vmatmul.mubr.bf16.gmra.mrb[0].mxu0 %v1433
    %v1560 = vpop.f32.mrb[0].mxu0
    %v1561 = vadd.f32 %v1460, %v1560
    %v1562 = vpop.f32.mrb[0].mxu0
    %v1563 = vpop.f32.mrb[0].mxu0
    %v1564 = vadd.f32 %v1460, %v1563
    %v1565 = vpop.f32.mrb[0].mxu0
    %1566 = vmatprep.mubr.bf16.mxu0 0
    %1567 = vmatmul.mubr.bf16.gmra.mrb[0].mxu0 %v1434
    %v1568 = vpop.f32.mrb[0].mxu0
    %v1569 = vadd.f32 %v1460, %v1568
    %v1570 = vpop.f32.mrb[0].mxu0
    %v1571 = vpop.f32.mrb[0].mxu0
    %v1572 = vadd.f32 %v1460, %v1571
    %v1573 = vpop.f32.mrb[0].mxu0
    %1574 = vmatprep.mubr.bf16.mxu0 0
    %1575 = vmatmul.mubr.bf16.gmra.mrb[0].mxu0 %v1435
    %v1576 = vpop.f32.mrb[0].mxu0
    %v1577 = vadd.f32 %v1460, %v1576
    %v1578 = vpop.f32.mrb[0].mxu0
    %v1579 = vpop.f32.mrb[0].mxu0
    %v1580 = vadd.f32 %v1460, %v1579
    %v1581 = vpop.f32.mrb[0].mxu0
    %1582 = vmatprep.mubr.bf16.mxu0 0
    %1583 = vmatmul.mubr.bf16.gmra.mrb[0].mxu0 %v1436
    %v1584 = vpop.f32.mrb[0].mxu0
    %v1585 = vadd.f32 %v1460, %v1584
    %v1586 = vpop.f32.mrb[0].mxu0
    %v1587 = vpop.f32.mrb[0].mxu0
    %v1588 = vadd.f32 %v1460, %v1587
    %v1589 = vpop.f32.mrb[0].mxu0
    %1590 = vmatprep.mubr.bf16.mxu0 0
    %1591 = vmatmul.mubr.bf16.gmra.mrb[0].mxu0 %v1437
    %v1592 = vpop.f32.mrb[0].mxu0
    %v1593 = vadd.f32 %v1460, %v1592
    %v1594 = vpop.f32.mrb[0].mxu0
    %v1595 = vpop.f32.mrb[0].mxu0
    %v1596 = vadd.f32 %v1460, %v1595
    %v1597 = vpop.f32.mrb[0].mxu0
    %1598 = vmatprep.mubr.bf16.mxu0 0
    %1599 = vmatmul.mubr.bf16.gmra.mrb[0].mxu0 %v1438
    %v1600 = vpop.f32.mrb[0].mxu0
    %v1601 = vadd.f32 %v1460, %v1600
    %v1602 = vpop.f32.mrb[0].mxu0
    %v1603 = vpop.f32.mrb[0].mxu0
    %v1604 = vadd.f32 %v1460, %v1603
    %v1605 = vpop.f32.mrb[0].mxu0
    %1606 = vdwg.mxu0
    %v1607 = vmax.f32 %v1545, 0.0
    %v1608 = vmax.f32 %v1548, 0.0
    %v1609 = vmax.f32 %v1553, 0.0
    %v1610 = vmax.f32 %v1556, 0.0
    %v1611 = vmax.f32 %v1561, 0.0
    %v1612 = vmax.f32 %v1564, 0.0
    %v1613 = vmax.f32 %v1569, 0.0
    %v1614 = vmax.f32 %v1572, 0.0
    %v1615 = vmax.f32 %v1577, 0.0
    %v1616 = vmax.f32 %v1580, 0.0
    %v1617 = vmax.f32 %v1585, 0.0
    %v1618 = vmax.f32 %v1588, 0.0
    %v1619 = vmax.f32 %v1593, 0.0
    %v1620 = vmax.f32 %v1596, 0.0
    %v1621 = vmax.f32 %v1601, 0.0
    %v1622 = vmax.f32 %v1604, 0.0
    %v1623 = vpack.c.bf16 %v1608, %v1607
    %v1624 = vpack.c.bf16 %v1610, %v1609
    %v1625 = vpack.c.bf16 %v1612, %v1611
    %v1626 = vpack.c.bf16 %v1614, %v1613
    %v1627 = vpack.c.bf16 %v1616, %v1615
    %v1628 = vpack.c.bf16 %v1618, %v1617
    %v1629 = vpack.c.bf16 %v1620, %v1619
    %v1630 = vpack.c.bf16 %v1622, %v1621
    %1631 = vmatprep.subr.bf16.mxu0 0
    %1632 = vmatpush1.bf16.msra.mxu0 %v1623
    %1633 = vmatprep.subr.bf16.mxu0 0
    %1634 = vmatpush1.bf16.msra.mxu0 %v1624
    %1635 = vmatprep.subr.bf16.mxu0 0
    %1636 = vmatpush1.bf16.msra.mxu0 %v1625
    %1637 = vmatprep.subr.bf16.mxu0 0
    %1638 = vmatpush1.bf16.msra.mxu0 %v1626
    %1639 = vmatprep.subr.bf16.mxu0 0
    %1640 = vmatpush1.bf16.msra.mxu0 %v1627
    %1641 = vmatprep.subr.bf16.mxu0 0
    %1642 = vmatpush1.bf16.msra.mxu0 %v1628
    %1643 = vmatprep.subr.bf16.mxu0 0
    %1644 = vmatpush1.bf16.msra.mxu0 %v1629
    %1645 = vmatprep.subr.bf16.mxu0 0
    %1646 = vmatpush1.bf16.msra.mxu0 %v1630
    %1647 = vmatprep.subr.bf16.mxu0 0
    %1648 = vmatpush1.bf16.msra.mxu0 0
    %1649 = vmatprep.subr.bf16.mxu0 0
    %1650 = vmatpush1.bf16.msra.mxu0 0
    %1651 = vmatprep.subr.bf16.mxu0 0
    %1652 = vmatpush1.bf16.msra.mxu0 0
    %1653 = vmatprep.subr.bf16.mxu0 0
    %1654 = vmatpush1.bf16.msra.mxu0 0
    %1655 = vmatprep.subr.bf16.mxu0 0
    %1656 = vmatpush1.bf16.msra.mxu0 0
    %1657 = vmatprep.subr.bf16.mxu0 0
    %1658 = vmatpush1.bf16.msra.mxu0 0
    %1659 = vmatprep.subr.bf16.mxu0 0
    %1660 = vmatpush1.bf16.msra.mxu0 0
    %1661 = vmatprep.subr.bf16.mxu0 0
    %1662 = vmatpush1.bf16.msra.mxu0 0
    %1663 = vmatprep.mubr.bf16.mxu0 0
    %1664 = vmatmul.mubr.bf16.gmra.mrb[0].mxu0 %v999
    %v1665 = vpop.f32.mrb[0].mxu0
    %v1666 = vadd.f32 %v747, %v1665
    %v1667 = vpop.f32.mrb[0].mxu0
    %v1668 = vpop.f32.mrb[0].mxu0
    %v1669 = vadd.f32 %v750, %v1668
    %v1670 = vpop.f32.mrb[0].mxu0
    %1671 = vdwg.mxu0
    %v1672 = vmax.f32 %v1666, 0.0
    %v1673 = vmax.f32 %v1669, 0.0
    %v1674 = vpack.c.bf16 %v1673, %v1672
    %1675 = vmatprep.subr.bf16.mxu0 0
    %1676 = vmatpush1.bf16.msra.mxu0 %v1674
    %1677 = vmatprep.subr.bf16.mxu0 0
    %1678 = vmatpush1.bf16.msra.mxu0 0
    %1679 = vmatprep.subr.bf16.mxu0 0
    %1680 = vmatpush1.bf16.msra.mxu0 0
    %1681 = vmatprep.subr.bf16.mxu0 0
    %1682 = vmatpush1.bf16.msra.mxu0 0
    %1683 = vmatprep.subr.bf16.mxu0 0
    %1684 = vmatpush1.bf16.msra.mxu0 0
    %1685 = vmatprep.subr.bf16.mxu0 0
    %1686 = vmatpush1.bf16.msra.mxu0 0
    %1687 = vmatprep.subr.bf16.mxu0 0
    %1688 = vmatpush1.bf16.msra.mxu0 0
    %1689 = vmatprep.subr.bf16.mxu0 0
    %1690 = vmatpush1.bf16.msra.mxu0 0
    %1691 = vmatprep.subr.bf16.mxu0 0
    %1692 = vmatpush1.bf16.msra.mxu0 0
    %1693 = vmatprep.subr.bf16.mxu0 0
    %1694 = vmatpush1.bf16.msra.mxu0 0
    %1695 = vmatprep.subr.bf16.mxu0 0
    %1696 = vmatpush1.bf16.msra.mxu0 0
    %1697 = vmatprep.subr.bf16.mxu0 0
    %1698 = vmatpush1.bf16.msra.mxu0 0
    %1699 = vmatprep.subr.bf16.mxu0 0
    %1700 = vmatpush1.bf16.msra.mxu0 0
    %1701 = vmatprep.subr.bf16.mxu0 0
    %1702 = vmatpush1.bf16.msra.mxu0 0
    %1703 = vmatprep.subr.bf16.mxu0 0
    %1704 = vmatpush1.bf16.msra.mxu0 0
    %1705 = vmatprep.subr.bf16.mxu0 0
    %1706 = vmatpush1.bf16.msra.mxu0 0
    %1707 = vmatprep.mubr.bf16.mxu0 0
    %1708 = vmatmul.mubr.bf16.gmra.mrb[0].mxu0 %v1103
    %v1709 = vpop.f32.mrb[0].mxu0
    %v1710 = vadd.f32 0.0, %v1709
    %v1711 = vpop.f32.mrb[0].mxu0
    %v1712 = vpop.f32.mrb[0].mxu0
    %v1713 = vadd.f32 0.0, %v1712
    %v1714 = vpop.f32.mrb[0].mxu0
    %1715 = vmatprep.mubr.bf16.mxu0 0
    %1716 = vmatmul.mubr.bf16.gmra.mrb[0].mxu0 %v1106
    %v1717 = vpop.f32.mrb[0].mxu0
    %v1718 = vadd.f32 0.0, %v1717
    %v1719 = vpop.f32.mrb[0].mxu0
    %v1720 = vpop.f32.mrb[0].mxu0
    %v1721 = vadd.f32 0.0, %v1720
    %v1722 = vpop.f32.mrb[0].mxu0
    %1723 = vmatprep.mubr.bf16.mxu0 0
    %1724 = vmatmul.mubr.bf16.gmra.mrb[0].mxu0 %v1109
    %v1725 = vpop.f32.mrb[0].mxu0
    %v1726 = vadd.f32 0.0, %v1725
    %v1727 = vpop.f32.mrb[0].mxu0
    %v1728 = vpop.f32.mrb[0].mxu0
    %v1729 = vadd.f32 0.0, %v1728
    %v1730 = vpop.f32.mrb[0].mxu0
    %1731 = vmatprep.mubr.bf16.mxu0 0
    %1732 = vmatmul.mubr.bf16.gmra.mrb[0].mxu0 %v1112
    %v1733 = vpop.f32.mrb[0].mxu0
    %v1734 = vadd.f32 0.0, %v1733
    %v1735 = vpop.f32.mrb[0].mxu0
    %v1736 = vpop.f32.mrb[0].mxu0
    %v1737 = vadd.f32 0.0, %v1736
    %v1738 = vpop.f32.mrb[0].mxu0
    %1739 = vmatprep.mubr.bf16.mxu0 0
    %1740 = vmatmul.mubr.bf16.gmra.mrb[0].mxu0 %v1115
    %v1741 = vpop.f32.mrb[0].mxu0
    %v1742 = vadd.f32 0.0, %v1741
    %v1743 = vpop.f32.mrb[0].mxu0
    %v1744 = vpop.f32.mrb[0].mxu0
    %v1745 = vadd.f32 0.0, %v1744
    %v1746 = vpop.f32.mrb[0].mxu0
    %1747 = vmatprep.mubr.bf16.mxu0 0
    %1748 = vmatmul.mubr.bf16.gmra.mrb[0].mxu0 %v1118
    %v1749 = vpop.f32.mrb[0].mxu0
    %v1750 = vadd.f32 0.0, %v1749
    %v1751 = vpop.f32.mrb[0].mxu0
    %v1752 = vpop.f32.mrb[0].mxu0
    %v1753 = vadd.f32 0.0, %v1752
    %v1754 = vpop.f32.mrb[0].mxu0
    %1755 = vmatprep.mubr.bf16.mxu0 0
    %1756 = vmatmul.mubr.bf16.gmra.mrb[0].mxu0 %v1121
    %v1757 = vpop.f32.mrb[0].mxu0
    %v1758 = vadd.f32 0.0, %v1757
    %v1759 = vpop.f32.mrb[0].mxu0
    %v1760 = vpop.f32.mrb[0].mxu0
    %v1761 = vadd.f32 0.0, %v1760
    %v1762 = vpop.f32.mrb[0].mxu0
    %1763 = vmatprep.mubr.bf16.mxu0 0
    %1764 = vmatmul.mubr.bf16.gmra.mrb[0].mxu0 %v1124
    %v1765 = vpop.f32.mrb[0].mxu0
    %v1766 = vadd.f32 0.0, %v1765
    %v1767 = vpop.f32.mrb[0].mxu0
    %v1768 = vpop.f32.mrb[0].mxu0
    %v1769 = vadd.f32 0.0, %v1768
    %v1770 = vpop.f32.mrb[0].mxu0
    %1771 = vdwg.mxu0
    %v1772 = vadd.f32 %v1607, %v1710
    %v1773 = vadd.f32 %v1608, %v1713
    %v1774 = vadd.f32 %v1609, %v1718
    %v1775 = vadd.f32 %v1610, %v1721
    %v1776 = vadd.f32 %v1611, %v1726
    %v1777 = vadd.f32 %v1612, %v1729
    %v1778 = vadd.f32 %v1613, %v1734
    %v1779 = vadd.f32 %v1614, %v1737
    %v1780 = vadd.f32 %v1615, %v1742
    %v1781 = vadd.f32 %v1616, %v1745
    %v1782 = vadd.f32 %v1617, %v1750
    %v1783 = vadd.f32 %v1618, %v1753
    %v1784 = vadd.f32 %v1619, %v1758
    %v1785 = vadd.f32 %v1620, %v1761
    %v1786 = vadd.f32 %v1621, %v1766
    %v1787 = vadd.f32 %v1622, %v1769
    %v1788 = vpack.c.bf16 %v1773, %v1772
    %v1789 = vpack.c.bf16 %v1775, %v1774
    %v1790 = vpack.c.bf16 %v1777, %v1776
    %v1791 = vpack.c.bf16 %v1779, %v1778
    %v1792 = vpack.c.bf16 %v1781, %v1780
    %v1793 = vpack.c.bf16 %v1783, %v1782
    %v1794 = vpack.c.bf16 %v1785, %v1784
    %v1795 = vpack.c.bf16 %v1787, %v1786
    %s1796 = scalar_lea.vmem %s17, 64
    %v1797 = vld [vmem:[%s1796] sm:$0xf]
    %v1798 = vld [vmem:[%s1796 + $0x4] sm:$0xf]
    %v1799 = vld [vmem:[%s1796 + $0x8] sm:$0xf]
    %v1800 = vld [vmem:[%s1796 + $0xc] sm:$0xf]
    %v1801 = vld [vmem:[%s1796 + $0x10] sm:$0xf]
    %v1802 = vld [vmem:[%s1796 + $0x14] sm:$0xf]
    %v1803 = vld [vmem:[%s1796 + $0x18] sm:$0xf]
    %v1804 = vld [vmem:[%s1796 + $0x1c] sm:$0xf]
    %v1805 = vld [vmem:[%s1796 + $0x20] sm:$0xf]
    %v1806 = vld [vmem:[%s1796 + $0x24] sm:$0xf]
    %v1807 = vld [vmem:[%s1796 + $0x28] sm:$0xf]
    %v1808 = vld [vmem:[%s1796 + $0x2c] sm:$0xf]
    %v1809 = vld [vmem:[%s1796 + $0x30] sm:$0xf]
    %v1810 = vld [vmem:[%s1796 + $0x34] sm:$0xf]
    %v1811 = vld [vmem:[%s1796 + $0x38] sm:$0xf]
    %v1812 = vld [vmem:[%s1796 + $0x3c] sm:$0xf]
    %s1813 = scalar_lea.vmem [#allocation24], 1
    %v1814 = vld [vmem:[%s1813] sm:$0x1]
    %v1816 = vlaneseq
    %v1817 = vshrl.u32 %v1816, 7
    %v1818 = vsub.s32 0, %v1817
    %v1819 = vrot.slane %v1814, %v1818
    %v1837 = vunpack.c.l.b16 %v1797
    %v1838 = vunpack.c.l.b16 %v1798
    %v1839 = vunpack.c.l.b16 %v1799
    %v1840 = vunpack.c.l.b16 %v1800
    %v1841 = vunpack.c.l.b16 %v1801
    %v1842 = vunpack.c.l.b16 %v1802
    %v1843 = vunpack.c.l.b16 %v1803
    %v1844 = vunpack.c.l.b16 %v1804
    %v1845 = vunpack.c.l.b16 %v1805
    %v1846 = vunpack.c.l.b16 %v1806
    %v1847 = vunpack.c.l.b16 %v1807
    %v1848 = vunpack.c.l.b16 %v1808
    %v1849 = vunpack.c.l.b16 %v1809
    %v1850 = vunpack.c.l.b16 %v1810
    %v1851 = vunpack.c.l.b16 %v1811
    %v1852 = vunpack.c.l.b16 %v1812
    %v1853 = vpack.c.b16 %v1838, %v1837
    %v1854 = vpack.c.b16 %v1840, %v1839
    %v1855 = vpack.c.b16 %v1842, %v1841
    %v1856 = vpack.c.b16 %v1844, %v1843
    %v1857 = vpack.c.b16 %v1846, %v1845
    %v1858 = vpack.c.b16 %v1848, %v1847
    %v1859 = vpack.c.b16 %v1850, %v1849
    %v1860 = vpack.c.b16 %v1852, %v1851
    %1869 = vmatprep.subr.bf16.mxu0 0
    %1870 = vmatpush1.bf16.msra.mxu0 %v1853
    %1871 = vmatprep.subr.bf16.mxu0 0
    %1872 = vmatpush1.bf16.msra.mxu0 %v1854
    %1873 = vmatprep.subr.bf16.mxu0 0
    %1874 = vmatpush1.bf16.msra.mxu0 %v1855
    %1875 = vmatprep.subr.bf16.mxu0 0
    %1876 = vmatpush1.bf16.msra.mxu0 %v1856
    %1877 = vmatprep.subr.bf16.mxu0 0
    %1878 = vmatpush1.bf16.msra.mxu0 %v1857
    %1879 = vmatprep.subr.bf16.mxu0 0
    %1880 = vmatpush1.bf16.msra.mxu0 %v1858
    %1881 = vmatprep.subr.bf16.mxu0 0
    %1882 = vmatpush1.bf16.msra.mxu0 %v1859
    %1883 = vmatprep.subr.bf16.mxu0 0
    %1884 = vmatpush1.bf16.msra.mxu0 %v1860
    %1885 = vmatprep.subr.bf16.mxu0 0
    %1886 = vmatpush1.bf16.msra.mxu0 0
    %1887 = vmatprep.subr.bf16.mxu0 0
    %1888 = vmatpush1.bf16.msra.mxu0 0
    %1889 = vmatprep.subr.bf16.mxu0 0
    %1890 = vmatpush1.bf16.msra.mxu0 0
    %1891 = vmatprep.subr.bf16.mxu0 0
    %1892 = vmatpush1.bf16.msra.mxu0 0
    %1893 = vmatprep.subr.bf16.mxu0 0
    %1894 = vmatpush1.bf16.msra.mxu0 0
    %1895 = vmatprep.subr.bf16.mxu0 0
    %1896 = vmatpush1.bf16.msra.mxu0 0
    %1897 = vmatprep.subr.bf16.mxu0 0
    %1898 = vmatpush1.bf16.msra.mxu0 0
    %1899 = vmatprep.subr.bf16.mxu0 0
    %1900 = vmatpush1.bf16.msra.mxu0 0
    %1901 = vmatprep.mubr.bf16.mxu0 0
    %1902 = vmatmul.mubr.bf16.gmra.mrb[0].mxu0 %v1788
    %v1903 = vpop.f32.mrb[0].mxu0
    %v1904 = vadd.f32 %v1819, %v1903
    %v1905 = vpop.f32.mrb[0].mxu0
    %v1906 = vpop.f32.mrb[0].mxu0
    %v1907 = vadd.f32 %v1819, %v1906
    %v1908 = vpop.f32.mrb[0].mxu0
    %1909 = vmatprep.mubr.bf16.mxu0 0
    %1910 = vmatmul.mubr.bf16.gmra.mrb[0].mxu0 %v1789
    %v1911 = vpop.f32.mrb[0].mxu0
    %v1912 = vadd.f32 %v1819, %v1911
    %v1913 = vpop.f32.mrb[0].mxu0
    %v1914 = vpop.f32.mrb[0].mxu0
    %v1915 = vadd.f32 %v1819, %v1914
    %v1916 = vpop.f32.mrb[0].mxu0
    %1917 = vmatprep.mubr.bf16.mxu0 0
    %1918 = vmatmul.mubr.bf16.gmra.mrb[0].mxu0 %v1790
    %v1919 = vpop.f32.mrb[0].mxu0
    %v1920 = vadd.f32 %v1819, %v1919
    %v1921 = vpop.f32.mrb[0].mxu0
    %v1922 = vpop.f32.mrb[0].mxu0
    %v1923 = vadd.f32 %v1819, %v1922
    %v1924 = vpop.f32.mrb[0].mxu0
    %1925 = vmatprep.mubr.bf16.mxu0 0
    %1926 = vmatmul.mubr.bf16.gmra.mrb[0].mxu0 %v1791
    %v1927 = vpop.f32.mrb[0].mxu0
    %v1928 = vadd.f32 %v1819, %v1927
    %v1929 = vpop.f32.mrb[0].mxu0
    %v1930 = vpop.f32.mrb[0].mxu0
    %v1931 = vadd.f32 %v1819, %v1930
    %v1932 = vpop.f32.mrb[0].mxu0
    %1933 = vmatprep.mubr.bf16.mxu0 0
    %1934 = vmatmul.mubr.bf16.gmra.mrb[0].mxu0 %v1792
    %v1935 = vpop.f32.mrb[0].mxu0
    %v1936 = vadd.f32 %v1819, %v1935
    %v1937 = vpop.f32.mrb[0].mxu0
    %v1938 = vpop.f32.mrb[0].mxu0
    %v1939 = vadd.f32 %v1819, %v1938
    %v1940 = vpop.f32.mrb[0].mxu0
    %1941 = vmatprep.mubr.bf16.mxu0 0
    %1942 = vmatmul.mubr.bf16.gmra.mrb[0].mxu0 %v1793
    %v1943 = vpop.f32.mrb[0].mxu0
    %v1944 = vadd.f32 %v1819, %v1943
    %v1945 = vpop.f32.mrb[0].mxu0
    %v1946 = vpop.f32.mrb[0].mxu0
    %v1947 = vadd.f32 %v1819, %v1946
    %v1948 = vpop.f32.mrb[0].mxu0
    %1949 = vmatprep.mubr.bf16.mxu0 0
    %1950 = vmatmul.mubr.bf16.gmra.mrb[0].mxu0 %v1794
    %v1951 = vpop.f32.mrb[0].mxu0
    %v1952 = vadd.f32 %v1819, %v1951
    %v1953 = vpop.f32.mrb[0].mxu0
    %v1954 = vpop.f32.mrb[0].mxu0
    %v1955 = vadd.f32 %v1819, %v1954
    %v1956 = vpop.f32.mrb[0].mxu0
    %1957 = vmatprep.mubr.bf16.mxu0 0
    %1958 = vmatmul.mubr.bf16.gmra.mrb[0].mxu0 %v1795
    %v1959 = vpop.f32.mrb[0].mxu0
    %v1960 = vadd.f32 %v1819, %v1959
    %v1961 = vpop.f32.mrb[0].mxu0
    %v1962 = vpop.f32.mrb[0].mxu0
    %v1963 = vadd.f32 %v1819, %v1962
    %v1964 = vpop.f32.mrb[0].mxu0
    %1965 = vdwg.mxu0
    %v1966 = vmax.f32 %v1904, 0.0
    %v1967 = vmax.f32 %v1907, 0.0
    %v1968 = vmax.f32 %v1912, 0.0
    %v1969 = vmax.f32 %v1915, 0.0
    %v1970 = vmax.f32 %v1920, 0.0
    %v1971 = vmax.f32 %v1923, 0.0
    %v1972 = vmax.f32 %v1928, 0.0
    %v1973 = vmax.f32 %v1931, 0.0
    %v1974 = vmax.f32 %v1936, 0.0
    %v1975 = vmax.f32 %v1939, 0.0
    %v1976 = vmax.f32 %v1944, 0.0
    %v1977 = vmax.f32 %v1947, 0.0
    %v1978 = vmax.f32 %v1952, 0.0
    %v1979 = vmax.f32 %v1955, 0.0
    %v1980 = vmax.f32 %v1960, 0.0
    %v1981 = vmax.f32 %v1963, 0.0
    %v1982 = vpack.c.bf16 %v1967, %v1966
    %v1983 = vpack.c.bf16 %v1969, %v1968
    %v1984 = vpack.c.bf16 %v1971, %v1970
    %v1985 = vpack.c.bf16 %v1973, %v1972
    %v1986 = vpack.c.bf16 %v1975, %v1974
    %v1987 = vpack.c.bf16 %v1977, %v1976
    %v1988 = vpack.c.bf16 %v1979, %v1978
    %v1989 = vpack.c.bf16 %v1981, %v1980
    %s1990 = scalar_lea.vmem [#allocation25], 64
    %v1991 = vld [vmem:[%s1990] sm:$0xf]
    %v1992 = vld [vmem:[%s1990 + $0x4] sm:$0xf]
    %v1993 = vld [vmem:[%s1990 + $0x8] sm:$0xf]
    %v1994 = vld [vmem:[%s1990 + $0xc] sm:$0xf]
    %v1995 = vld [vmem:[%s1990 + $0x10] sm:$0xf]
    %v1996 = vld [vmem:[%s1990 + $0x14] sm:$0xf]
    %v1997 = vld [vmem:[%s1990 + $0x18] sm:$0xf]
    %v1998 = vld [vmem:[%s1990 + $0x1c] sm:$0xf]
    %v1999 = vld [vmem:[%s1990 + $0x20] sm:$0xf]
    %v2000 = vld [vmem:[%s1990 + $0x24] sm:$0xf]
    %v2001 = vld [vmem:[%s1990 + $0x28] sm:$0xf]
    %v2002 = vld [vmem:[%s1990 + $0x2c] sm:$0xf]
    %v2003 = vld [vmem:[%s1990 + $0x30] sm:$0xf]
    %v2004 = vld [vmem:[%s1990 + $0x34] sm:$0xf]
    %v2005 = vld [vmem:[%s1990 + $0x38] sm:$0xf]
    %v2006 = vld [vmem:[%s1990 + $0x3c] sm:$0xf]
    %s2007 = scalar_lea.vmem [#allocation27], 1
    %v2008 = vld [vmem:[%s2007] sm:$0x1]
    %v2010 = vlaneseq
    %v2011 = vshrl.u32 %v2010, 7
    %v2012 = vsub.s32 0, %v2011
    %v2013 = vrot.slane %v2008, %v2012
    %v2031 = vunpack.c.l.b16 %v1991
    %v2032 = vunpack.c.l.b16 %v1992
    %v2033 = vunpack.c.l.b16 %v1993
    %v2034 = vunpack.c.l.b16 %v1994
    %v2035 = vunpack.c.l.b16 %v1995
    %v2036 = vunpack.c.l.b16 %v1996
    %v2037 = vunpack.c.l.b16 %v1997
    %v2038 = vunpack.c.l.b16 %v1998
    %v2039 = vunpack.c.l.b16 %v1999
    %v2040 = vunpack.c.l.b16 %v2000
    %v2041 = vunpack.c.l.b16 %v2001
    %v2042 = vunpack.c.l.b16 %v2002
    %v2043 = vunpack.c.l.b16 %v2003
    %v2044 = vunpack.c.l.b16 %v2004
    %v2045 = vunpack.c.l.b16 %v2005
    %v2046 = vunpack.c.l.b16 %v2006
    %v2047 = vpack.c.b16 %v2032, %v2031
    %v2048 = vpack.c.b16 %v2034, %v2033
    %v2049 = vpack.c.b16 %v2036, %v2035
    %v2050 = vpack.c.b16 %v2038, %v2037
    %v2051 = vpack.c.b16 %v2040, %v2039
    %v2052 = vpack.c.b16 %v2042, %v2041
    %v2053 = vpack.c.b16 %v2044, %v2043
    %v2054 = vpack.c.b16 %v2046, %v2045
    %2063 = vmatprep.subr.bf16.mxu0 0
    %2064 = vmatpush1.bf16.msra.mxu0 %v2047
    %2065 = vmatprep.subr.bf16.mxu0 0
    %2066 = vmatpush1.bf16.msra.mxu0 %v2048
    %2067 = vmatprep.subr.bf16.mxu0 0
    %2068 = vmatpush1.bf16.msra.mxu0 %v2049
    %2069 = vmatprep.subr.bf16.mxu0 0
    %2070 = vmatpush1.bf16.msra.mxu0 %v2050
    %2071 = vmatprep.subr.bf16.mxu0 0
    %2072 = vmatpush1.bf16.msra.mxu0 %v2051
    %2073 = vmatprep.subr.bf16.mxu0 0
    %2074 = vmatpush1.bf16.msra.mxu0 %v2052
    %2075 = vmatprep.subr.bf16.mxu0 0
    %2076 = vmatpush1.bf16.msra.mxu0 %v2053
    %2077 = vmatprep.subr.bf16.mxu0 0
    %2078 = vmatpush1.bf16.msra.mxu0 %v2054
    %2079 = vmatprep.subr.bf16.mxu0 0
    %2080 = vmatpush1.bf16.msra.mxu0 0
    %2081 = vmatprep.subr.bf16.mxu0 0
    %2082 = vmatpush1.bf16.msra.mxu0 0
    %2083 = vmatprep.subr.bf16.mxu0 0
    %2084 = vmatpush1.bf16.msra.mxu0 0
    %2085 = vmatprep.subr.bf16.mxu0 0
    %2086 = vmatpush1.bf16.msra.mxu0 0
    %2087 = vmatprep.subr.bf16.mxu0 0
    %2088 = vmatpush1.bf16.msra.mxu0 0
    %2089 = vmatprep.subr.bf16.mxu0 0
    %2090 = vmatpush1.bf16.msra.mxu0 0
    %2091 = vmatprep.subr.bf16.mxu0 0
    %2092 = vmatpush1.bf16.msra.mxu0 0
    %2093 = vmatprep.subr.bf16.mxu0 0
    %2094 = vmatpush1.bf16.msra.mxu0 0
    %2095 = vmatprep.mubr.bf16.mxu0 0
    %2096 = vmatmul.mubr.bf16.gmra.mrb[0].mxu0 %v1982
    %v2097 = vpop.f32.mrb[0].mxu0
    %v2098 = vadd.f32 %v2013, %v2097
    %v2099 = vpop.f32.mrb[0].mxu0
    %v2100 = vpop.f32.mrb[0].mxu0
    %v2101 = vadd.f32 %v2013, %v2100
    %v2102 = vpop.f32.mrb[0].mxu0
    %2103 = vmatprep.mubr.bf16.mxu0 0
    %2104 = vmatmul.mubr.bf16.gmra.mrb[0].mxu0 %v1983
    %v2105 = vpop.f32.mrb[0].mxu0
    %v2106 = vadd.f32 %v2013, %v2105
    %v2107 = vpop.f32.mrb[0].mxu0
    %v2108 = vpop.f32.mrb[0].mxu0
    %v2109 = vadd.f32 %v2013, %v2108
    %v2110 = vpop.f32.mrb[0].mxu0
    %2111 = vmatprep.mubr.bf16.mxu0 0
    %2112 = vmatmul.mubr.bf16.gmra.mrb[0].mxu0 %v1984
    %v2113 = vpop.f32.mrb[0].mxu0
    %v2114 = vadd.f32 %v2013, %v2113
    %v2115 = vpop.f32.mrb[0].mxu0
    %v2116 = vpop.f32.mrb[0].mxu0
    %v2117 = vadd.f32 %v2013, %v2116
    %v2118 = vpop.f32.mrb[0].mxu0
    %2119 = vmatprep.mubr.bf16.mxu0 0
    %2120 = vmatmul.mubr.bf16.gmra.mrb[0].mxu0 %v1985
    %v2121 = vpop.f32.mrb[0].mxu0
    %v2122 = vadd.f32 %v2013, %v2121
    %v2123 = vpop.f32.mrb[0].mxu0
    %v2124 = vpop.f32.mrb[0].mxu0
    %v2125 = vadd.f32 %v2013, %v2124
    %v2126 = vpop.f32.mrb[0].mxu0
    %2127 = vmatprep.mubr.bf16.mxu0 0
    %2128 = vmatmul.mubr.bf16.gmra.mrb[0].mxu0 %v1986
    %v2129 = vpop.f32.mrb[0].mxu0
    %v2130 = vadd.f32 %v2013, %v2129
    %v2131 = vpop.f32.mrb[0].mxu0
    %v2132 = vpop.f32.mrb[0].mxu0
    %v2133 = vadd.f32 %v2013, %v2132
    %v2134 = vpop.f32.mrb[0].mxu0
    %2135 = vmatprep.mubr.bf16.mxu0 0
    %2136 = vmatmul.mubr.bf16.gmra.mrb[0].mxu0 %v1987
    %v2137 = vpop.f32.mrb[0].mxu0
    %v2138 = vadd.f32 %v2013, %v2137
    %v2139 = vpop.f32.mrb[0].mxu0
    %v2140 = vpop.f32.mrb[0].mxu0
    %v2141 = vadd.f32 %v2013, %v2140
    %v2142 = vpop.f32.mrb[0].mxu0
    %2143 = vmatprep.mubr.bf16.mxu0 0
    %2144 = vmatmul.mubr.bf16.gmra.mrb[0].mxu0 %v1988
    %v2145 = vpop.f32.mrb[0].mxu0
    %v2146 = vadd.f32 %v2013, %v2145
    %v2147 = vpop.f32.mrb[0].mxu0
    %v2148 = vpop.f32.mrb[0].mxu0
    %v2149 = vadd.f32 %v2013, %v2148
    %v2150 = vpop.f32.mrb[0].mxu0
    %2151 = vmatprep.mubr.bf16.mxu0 0
    %2152 = vmatmul.mubr.bf16.gmra.mrb[0].mxu0 %v1989
    %v2153 = vpop.f32.mrb[0].mxu0
    %v2154 = vadd.f32 %v2013, %v2153
    %v2155 = vpop.f32.mrb[0].mxu0
    %v2156 = vpop.f32.mrb[0].mxu0
    %v2157 = vadd.f32 %v2013, %v2156
    %v2158 = vpop.f32.mrb[0].mxu0
    %2159 = vdwg.mxu0
    %v2160 = vmax.f32 %v2098, 0.0
    %v2161 = vmax.f32 %v2101, 0.0
    %v2162 = vmax.f32 %v2106, 0.0
    %v2163 = vmax.f32 %v2109, 0.0
    %v2164 = vmax.f32 %v2114, 0.0
    %v2165 = vmax.f32 %v2117, 0.0
    %v2166 = vmax.f32 %v2122, 0.0
    %v2167 = vmax.f32 %v2125, 0.0
    %v2168 = vmax.f32 %v2130, 0.0
    %v2169 = vmax.f32 %v2133, 0.0
    %v2170 = vmax.f32 %v2138, 0.0
    %v2171 = vmax.f32 %v2141, 0.0
    %v2172 = vmax.f32 %v2146, 0.0
    %v2173 = vmax.f32 %v2149, 0.0
    %v2174 = vmax.f32 %v2154, 0.0
    %v2175 = vmax.f32 %v2157, 0.0
    %v2176 = vld [vmem:[#allocation6] sm:$0xf]
    %v2177 = vpack.c.bf16 %v2161, %v2160
    %v2178 = vpack.c.bf16 %v2163, %v2162
    %v2179 = vpack.c.bf16 %v2165, %v2164
    %v2180 = vpack.c.bf16 %v2167, %v2166
    %v2181 = vpack.c.bf16 %v2169, %v2168
    %v2182 = vpack.c.bf16 %v2171, %v2170
    %v2183 = vpack.c.bf16 %v2173, %v2172
    %v2184 = vpack.c.bf16 %v2175, %v2174
    %2185 = vmatprep.subr.bf16.mxu0 0
    %2186 = vmatpush1.bf16.msra.mxu0 %v2177
    %2187 = vmatprep.subr.bf16.mxu0 0
    %2188 = vmatpush1.bf16.msra.mxu0 %v2178
    %2189 = vmatprep.subr.bf16.mxu0 0
    %2190 = vmatpush1.bf16.msra.mxu0 %v2179
    %2191 = vmatprep.subr.bf16.mxu0 0
    %2192 = vmatpush1.bf16.msra.mxu0 %v2180
    %2193 = vmatprep.subr.bf16.mxu0 0
    %2194 = vmatpush1.bf16.msra.mxu0 %v2181
    %2195 = vmatprep.subr.bf16.mxu0 0
    %2196 = vmatpush1.bf16.msra.mxu0 %v2182
    %2197 = vmatprep.subr.bf16.mxu0 0
    %2198 = vmatpush1.bf16.msra.mxu0 %v2183
    %2199 = vmatprep.subr.bf16.mxu0 0
    %2200 = vmatpush1.bf16.msra.mxu0 %v2184
    %2201 = vmatprep.subr.bf16.mxu0 0
    %2202 = vmatpush1.bf16.msra.mxu0 0
    %2203 = vmatprep.subr.bf16.mxu0 0
    %2204 = vmatpush1.bf16.msra.mxu0 0
    %2205 = vmatprep.subr.bf16.mxu0 0
    %2206 = vmatpush1.bf16.msra.mxu0 0
    %2207 = vmatprep.subr.bf16.mxu0 0
    %2208 = vmatpush1.bf16.msra.mxu0 0
    %2209 = vmatprep.subr.bf16.mxu0 0
    %2210 = vmatpush1.bf16.msra.mxu0 0
    %2211 = vmatprep.subr.bf16.mxu0 0
    %2212 = vmatpush1.bf16.msra.mxu0 0
    %2213 = vmatprep.subr.bf16.mxu0 0
    %2214 = vmatpush1.bf16.msra.mxu0 0
    %2215 = vmatprep.subr.bf16.mxu0 0
    %2216 = vmatpush1.bf16.msra.mxu0 0
    %2217 = vmatprep.mubr.bf16.mxu0 0
    %2218 = vmatmul.mubr.bf16.gmra.mrb[0].mxu0 %v2176
    %v2219 = vpop.f32.mrb[0].mxu0
    %v2220 = vadd.f32 0.0, %v2219
    %v2221 = vpop.f32.mrb[0].mxu0
    %v2222 = vpop.f32.mrb[0].mxu0
    %v2223 = vpop.f32.mrb[0].mxu0
    %2224 = vdwg.mxu0
    %v2225 = vpack.c.bf16 %v2220, %v2220
    %v2226 = vld [vmem:[%s21] sm:$0xf]
    %v2227 = vld [vmem:[%s21 + $0x4] sm:$0xf]
    %v2228 = vld [vmem:[%s21 + $0x8] sm:$0xf]
    %v2229 = vld [vmem:[%s21 + $0xc] sm:$0xf]
    %v2230 = vld [vmem:[%s21 + $0x10] sm:$0xf]
    %v2231 = vld [vmem:[%s21 + $0x14] sm:$0xf]
    %v2232 = vld [vmem:[%s21 + $0x18] sm:$0xf]
    %v2233 = vld [vmem:[%s21 + $0x1c] sm:$0xf]
    %v2234 = vld [vmem:[%s21 + $0x20] sm:$0xf]
    %v2235 = vld [vmem:[%s21 + $0x24] sm:$0xf]
    %v2236 = vld [vmem:[%s21 + $0x28] sm:$0xf]
    %v2237 = vld [vmem:[%s21 + $0x2c] sm:$0xf]
    %v2238 = vld [vmem:[%s21 + $0x30] sm:$0xf]
    %v2239 = vld [vmem:[%s21 + $0x34] sm:$0xf]
    %v2240 = vld [vmem:[%s21 + $0x38] sm:$0xf]
    %v2241 = vld [vmem:[%s21 + $0x3c] sm:$0xf]
    %v2242 = vld [vmem:[#allocation28] sm:$0x1]
    %v2244 = vlaneseq
    %v2245 = vshrl.u32 %v2244, 7
    %v2246 = vsub.s32 0, %v2245
    %v2247 = vrot.slane %v2242, %v2246
    %v2265 = vunpack.c.l.b16 %v2226
    %v2266 = vunpack.c.l.b16 %v2227
    %v2267 = vunpack.c.l.b16 %v2228
    %v2268 = vunpack.c.l.b16 %v2229
    %v2269 = vunpack.c.l.b16 %v2230
    %v2270 = vunpack.c.l.b16 %v2231
    %v2271 = vunpack.c.l.b16 %v2232
    %v2272 = vunpack.c.l.b16 %v2233
    %v2273 = vunpack.c.l.b16 %v2234
    %v2274 = vunpack.c.l.b16 %v2235
    %v2275 = vunpack.c.l.b16 %v2236
    %v2276 = vunpack.c.l.b16 %v2237
    %v2277 = vunpack.c.l.b16 %v2238
    %v2278 = vunpack.c.l.b16 %v2239
    %v2279 = vunpack.c.l.b16 %v2240
    %v2280 = vunpack.c.l.b16 %v2241
    %v2281 = vpack.c.b16 %v2266, %v2265
    %v2282 = vpack.c.b16 %v2268, %v2267
    %v2283 = vpack.c.b16 %v2270, %v2269
    %v2284 = vpack.c.b16 %v2272, %v2271
    %v2285 = vpack.c.b16 %v2274, %v2273
    %v2286 = vpack.c.b16 %v2276, %v2275
    %v2287 = vpack.c.b16 %v2278, %v2277
    %v2288 = vpack.c.b16 %v2280, %v2279
    %2297 = vmatprep.subr.bf16.mxu0 0
    %2298 = vmatpush1.bf16.msra.mxu0 %v2281
    %2299 = vmatprep.subr.bf16.mxu0 0
    %2300 = vmatpush1.bf16.msra.mxu0 %v2282
    %2301 = vmatprep.subr.bf16.mxu0 0
    %2302 = vmatpush1.bf16.msra.mxu0 %v2283
    %2303 = vmatprep.subr.bf16.mxu0 0
    %2304 = vmatpush1.bf16.msra.mxu0 %v2284
    %2305 = vmatprep.subr.bf16.mxu0 0
    %2306 = vmatpush1.bf16.msra.mxu0 %v2285
    %2307 = vmatprep.subr.bf16.mxu0 0
    %2308 = vmatpush1.bf16.msra.mxu0 %v2286
    %2309 = vmatprep.subr.bf16.mxu0 0
    %2310 = vmatpush1.bf16.msra.mxu0 %v2287
    %2311 = vmatprep.subr.bf16.mxu0 0
    %2312 = vmatpush1.bf16.msra.mxu0 %v2288
    %2313 = vmatprep.subr.bf16.mxu0 0
    %2314 = vmatpush1.bf16.msra.mxu0 0
    %2315 = vmatprep.subr.bf16.mxu0 0
    %2316 = vmatpush1.bf16.msra.mxu0 0
    %2317 = vmatprep.subr.bf16.mxu0 0
    %2318 = vmatpush1.bf16.msra.mxu0 0
    %2319 = vmatprep.subr.bf16.mxu0 0
    %2320 = vmatpush1.bf16.msra.mxu0 0
    %2321 = vmatprep.subr.bf16.mxu0 0
    %2322 = vmatpush1.bf16.msra.mxu0 0
    %2323 = vmatprep.subr.bf16.mxu0 0
    %2324 = vmatpush1.bf16.msra.mxu0 0
    %2325 = vmatprep.subr.bf16.mxu0 0
    %2326 = vmatpush1.bf16.msra.mxu0 0
    %2327 = vmatprep.subr.bf16.mxu0 0
    %2328 = vmatpush1.bf16.msra.mxu0 0
    %2329 = vmatprep.mubr.bf16.mxu0 0
    %2330 = vmatmul.mubr.bf16.gmra.mrb[0].mxu0 %v2225
    %v2331 = vpop.f32.mrb[0].mxu0
    %v2332 = vadd.f32 %v2247, %v2331
    %v2333 = vpop.f32.mrb[0].mxu0
    %v2334 = vpop.f32.mrb[0].mxu0
    %v2335 = vpop.f32.mrb[0].mxu0
    %2336 = vdwg.mxu0
    %2337 = vst [vmem:[%s23] sm:$0xff] %v2332
    // Predicated region
    $region166: #{cyclenet_forward.1} parent=1 // pred_check
      _
    $region167: #{cyclenet_forward.1} parent=1 // pred_check_branch
      %2339 = sbr.rel (0) target = $region169
    $region168: #{cyclenet_forward.1} parent=1 // pred_region
      _
    $region169: #{cyclenet_forward.1} parent=1 // pred_fallthru
      _
    // Predicated region
    $region170: #{cyclenet_forward.1} parent=1 // pred_check
      _
    $region171: #{cyclenet_forward.1} parent=1 // pred_check_branch
      %2341 = sbr.rel (0) target = $region173
    $region172: #{cyclenet_forward.1} parent=1 // pred_region
      _
    $region173: #{cyclenet_forward.1} parent=1 // pred_fallthru
      _
    %2342 = vsyncpa [#allocation3], 1
    %2343 = vsyncpa [#allocation5], 1
    %2344 = vsyncpa [#allocation8], 1
    %2345 = vsyncpa [#allocation11], 1
    %2346 = vsyncpa [#allocation14], 1
    %2347 = vsyncpa [#allocation17], 1
    %2348 = vsyncpa [#allocation20], 1
    %2349 = vsyncpa [#allocation23], 1
    %2350 = vsyncpa [#allocation26], 1
    %2351 = vsyncpa [#allocation29], 1

</llo_original>
